<compile_context>
chip_gen: v7x
topology: tpu7x:2x2x1
jax: 0.10.0
libtpu: 0.0.40
codegen_flags: <defaults>
</compile_context>

<pallas_src>
import jax
import jax.numpy as jnp
from jax.experimental import pallas as pl
from jax.experimental.pallas import tpu as pltpu


# ----------------------------------------------------------------------------
# Host-side packing: many small Linear layers -> a few VMEM-friendly slabs.
# ----------------------------------------------------------------------------
class _Packer:
    def __init__(self):
        self._big = []      # exact (256,256) weights -> stacked (k,256,256)
        self._wide = []     # dout == 256, din < 256  -> rows of a (R,256) slab
        self._small = []    # dout <= 128             -> rows of a (R,128) slab
        self._fsq = []      # FSQ projections (f32)   -> rows of a (R,16) slab
        self._bias = []     # every bias, zero-padded to 256 lanes
        self._wide_rows = 0
        self._small_rows = 0
        self._fsq_rows = 0

    @staticmethod
    def _pad_rows(n):
        return (n + 7) // 8 * 8          # keep every row offset 8-aligned

    def add_weight(self, w):
        din, dout = w.shape
        if din == 256 and dout == 256:
            self._big.append(w)
            return ("big", len(self._big) - 1, din, dout)
        rows = self._pad_rows(din)
        if dout == 256:
            blk = jnp.zeros((rows, 256), jnp.float32).at[:din, :].set(w)
            off = self._wide_rows
            self._wide.append(blk)
            self._wide_rows += rows
            return ("wide", off, din, dout)
        assert dout <= 128, f"unsupported layer width {dout}"
        blk = jnp.zeros((rows, 128), jnp.float32).at[:din, :dout].set(w)
        off = self._small_rows
        self._small.append(blk)
        self._small_rows += rows
        return ("small", off, din, dout)

    def add_fsq_weight(self, w):
        din, dout = w.shape
        assert dout <= 16
        rows = self._pad_rows(din)
        blk = jnp.zeros((rows, 16), jnp.float32).at[:din, :dout].set(w)
        off = self._fsq_rows
        self._fsq.append(blk)
        self._fsq_rows += rows
        return ("fsq", off, din, dout)

    def add_bias(self, b):
        b = jnp.reshape(b, (-1,))
        assert b.shape[0] <= 256
        self._bias.append(jnp.zeros((256,), jnp.float32).at[: b.shape[0]].set(b))
        return len(self._bias) - 1

    def finalize(self):
        return {
            "big": jnp.stack(self._big).astype(jnp.bfloat16),
            "wide": jnp.concatenate(self._wide, axis=0).astype(jnp.bfloat16),
            "small": jnp.concatenate(self._small, axis=0).astype(jnp.bfloat16),
            "fsq": jnp.concatenate(self._fsq, axis=0),     # stays f32
            "bias": jnp.stack(self._bias),                 # (n_bias, 256) f32
        }


def _fsq_constants(levels, num_codebooks):
    lv = jnp.tile(jnp.asarray(levels, jnp.float32), num_codebooks)[None, :]
    eps = 1e-3
    half_l = (lv - 1.0) * (1.0 + eps) / 2.0
    offset = jnp.where(jnp.mod(lv, 2.0) == 0.0, 0.5, 0.0)
    shift = jnp.arctanh(offset / half_l)
    inv_half_width = 1.0 / jnp.floor(lv / 2.0)
    return half_l, offset, shift, inv_half_width


def pack_model(params, levels, num_codebooks, latent_dim, vq_dim):
    """Fold FSQ constants into the projection params and pack all weights."""
    half_l, offset, shift, inv_hw = _fsq_constants(levels, num_codebooks)

    (w_in, b_in), = params["fsq_project_in"]
    (w_out, b_out), = params["fsq_project_out"]
    b_in = jnp.reshape(b_in, (-1,)) + shift[0]         # fold arctanh shift
    w_out = w_out * inv_hw[0][:, None]                 # fold 1 / half_width

    pk = _Packer()

    def plain(layers):
        return [(pk.add_weight(w), pk.add_bias(b)) for w, b in layers]

    def split(layers, split_at):
        (w0, b0), rest = layers[0], layers[1:]
        head = (pk.add_weight(w0[:split_at]), pk.add_weight(w0[split_at:]),
                pk.add_bias(b0))
        return (head, plain(rest))

    layout = {
        "x_encoder": plain(params["x_encoder"]),
        "x_decoder": plain(params["x_decoder"]),
        "latent_action": split(params["latent_action"], latent_dim),
        "fsq_in": (pk.add_fsq_weight(w_in), pk.add_bias(b_in)),
        "fsq_out": (pk.add_fsq_weight(w_out), pk.add_bias(b_out)),
        "latent_dynamics": split(params["latent_dynamics"], vq_dim),
        "a_decoder": split(params["a_decoder"], vq_dim),
    }
    slabs = pk.finalize()
    slabs["consts"] = jnp.concatenate([half_l, offset], axis=0)   # (2, n_codes)
    return slabs, layout


# ----------------------------------------------------------------------------
# Fused forward pass (single gridless pallas_call).
# ----------------------------------------------------------------------------
def make_forward(layout, *, B, T, input_dim, latent_dim, action_dim, code_dim):
    """Returns a jittable forward(slabs, x) that closes over the static layout."""
    N, Tc = B * T, T - 2
    F, L, A = input_dim, latent_dim, action_dim
    OUT_W = F + 2 * L + A        # fused columns: [x_recon | zx | pred | a_pred]

    # ------------- in-kernel helpers (layout is static Python data) ----------
    def _w(refs, wd):
        slab, off, din, dout = wd
        r = refs[slab]
        return r[off] if slab == "big" else r[off:off + din, :dout]

    def _b(refs, bidx, dout):
        return refs["bias"][bidx:bidx + 1, :dout]

    def _dense(refs, h, wd, bidx, relu):
        w = _w(refs, wd)
        y = jnp.dot(h.astype(w.dtype), w, preferred_element_type=jnp.float32)
        y = y + _b(refs, bidx, wd[3])
        return jnp.maximum(y, 0.0) if relu else y

    def _dense_split(refs, ha, hb, wda, wdb, bidx, relu):
        """First layer of a head whose torch input is cat(ha, hb)."""
        wa, wb = _w(refs, wda), _w(refs, wdb)
        y = (jnp.dot(ha.astype(wa.dtype), wa, preferred_element_type=jnp.float32)
             + jnp.dot(hb.astype(wb.dtype), wb, preferred_element_type=jnp.float32)
             + _b(refs, bidx, wda[3]))
        return jnp.maximum(y, 0.0) if relu else y

    def _mlp(refs, h, descs):
        for i, (wd, bi) in enumerate(descs):
            h = _dense(refs, h, wd, bi, relu=i < len(descs) - 1)
        return h

    def _head(refs, ha, hb, head):
        (wda, wdb, bi), rest = head
        h = _dense_split(refs, ha, hb, wda, wdb, bi, relu=bool(rest))
        return _mlp(refs, h, rest) if rest else h

    def kernel(x_ref, consts_ref, big_ref, wide_ref, small_ref, fsq_ref,
               bias_ref, out_ref):
        refs = {"big": big_ref, "wide": wide_ref, "small": small_ref,
                "fsq": fsq_ref, "bias": bias_ref}

        x = x_ref[...]                                    # (N, F) f32
        x_bf = x.astype(jnp.bfloat16)                     # cast once, reused

        # ---- x_encoder / x_decoder over all N = B*T rows ----
        zx = _mlp(refs, x_bf, layout["x_encoder"])        # (N, L) f32
        zx_bf = zx.astype(jnp.bfloat16)
        x_recon = _mlp(refs, zx_bf, layout["x_decoder"])  # (N, F) f32

        # ---- temporal pairing via value-domain rolls (pltpu.roll == jnp.roll
        #      semantics): row r = b*T + t picks up index t+1 / t+2; rows that
        #      wrap a batch boundary are computed but discarded by the wrapper.
        z_hi = pltpu.roll(zx, shift=N - 2, axis=0).astype(jnp.bfloat16)   # zx[t+2]
        z_mid = pltpu.roll(zx, shift=N - 1, axis=0).astype(jnp.bfloat16)  # zx[t+1]
        x_mid = pltpu.roll(x, shift=N - 1, axis=0).astype(jnp.bfloat16)   # x[t+1]

        # ---- latent_action(cat(z_t, z_{t+2})) ----
        za = _head(refs, zx_bf, z_hi, layout["latent_action"])    # (N, VQ) f32

        # ---- FSQ: project_in -> bound & round -> project_out (all f32) ----
        # arctanh shift is folded into the project_in bias; 1/half_width is
        # folded into the project_out weight rows (host side).
        half_l = consts_ref[0:1, :]
        offset = consts_ref[1:2, :]
        zf = _dense(refs, za, *layout["fsq_in"], relu=False)         # (N, C)
        codes = jnp.round(jnp.tanh(zf) * half_l - offset)            # int codes
        vq_za = _dense(refs, codes, *layout["fsq_out"], relu=False)  # (N, VQ)
        vq_bf = vq_za.astype(jnp.bfloat16)

        # ---- latent_dynamics(cat(vq_za, zx[t+1])) / a_decoder(cat(vq_za, x[t+1]))
        pred = _head(refs, vq_bf, z_mid, layout["latent_dynamics"])  # (N, L)
        a_pred = _head(refs, vq_bf, x_mid, layout["a_decoder"])      # (N, A)

        # ---- single fused output slab ----
        out_ref[:, 0:F] = x_recon
        out_ref[:, F:F + L] = zx
        out_ref[:, F + L:F + 2 * L] = pred
        out_ref[:, F + 2 * L:OUT_W] = a_pred

    # ------------- static cost estimate (tiny kernel -> let XLA overlap) -----
    def _fl(wd):
        return 2 * wd[2] * wd[3]

    per_row = sum(_fl(wd) for name in ("x_encoder", "x_decoder")
                  for wd, _ in layout[name])
    for name in ("latent_action", "latent_dynamics", "a_decoder"):
        (wda, wdb, _), rest = layout[name]
        per_row += _fl(wda) + _fl(wdb) + sum(_fl(wd) for wd, _ in rest)
    per_row += _fl(layout["fsq_in"][0]) + _fl(layout["fsq_out"][0])
    total_flops = N * per_row
    total_transc = N * code_dim                     # the tanh in FSQ

    vmem = pl.BlockSpec(memory_space=pltpu.MemorySpace.VMEM)

    def forward(slabs, x):
        args = (x.reshape(N, F), slabs["consts"], slabs["big"], slabs["wide"],
                slabs["small"], slabs["fsq"], slabs["bias"])
        bytes_accessed = int(sum(a.size * a.dtype.itemsize for a in args)
                             + N * OUT_W * 4)
        out = pl.pallas_call(
            kernel,
            out_shape=jax.ShapeDtypeStruct((N, OUT_W), jnp.float32),
            in_specs=[vmem] * len(args),
            out_specs=vmem,
            cost_estimate=pl.CostEstimate(flops=total_flops,
                                          transcendentals=total_transc,
                                          bytes_accessed=bytes_accessed),
        )(*args)

        # Free layout plumbing in the wrapper: split columns, drop wrapped rows.
        x_recon = out[:, :F].reshape(B, T, F)
        zx = out[:, F:F + L].reshape(B, T, L)
        pred_zx_prime = out[:, F + L:F + 2 * L].reshape(B, T, L)[:, :Tc, :]
        a_pred = out[:, F + 2 * L:OUT_W].reshape(B, T, A)[:, :Tc, :]
        return x_recon, a_pred, zx, pred_zx_prime

    return forward


# ----------------------------------------------------------------------------
# Parameter init (torch.nn.Linear-style uniform(-1/sqrt(fan_in), +1/sqrt(fan_in))).
# ----------------------------------------------------------------------------
def _init_linear(key, din, dout):
    kw, kb = jax.random.split(key)
    bound = 1.0 / (din ** 0.5)
    w = jax.random.uniform(kw, (din, dout), jnp.float32, -bound, bound)
    b = jax.random.uniform(kb, (dout,), jnp.float32, -bound, bound)
    return w, b


def _init_mlp(key, dims):
    keys = jax.random.split(key, len(dims) - 1)
    return [_init_linear(k, di, do)
            for k, di, do in zip(keys, dims[:-1], dims[1:])]


if __name__ == "__main__":
    # Module hyper-params (small, consistent with the PyTorch __init__).
    raw_input_dim = 20
    mask_dim = (4,)                               # len==1 -> input_dim = 20 - 4
    input_dim = raw_input_dim - mask_dim[0]       # 16
    action_dim = 6
    hidden_dims = [32, 32]
    latent_dim = 4
    levels = [8, 5, 5, 5]
    num_codebooks = 2
    vq_dim = len(levels) * 4                      # 16
    code_dim = num_codebooks * len(levels)        # 8
    B, T = 2, 8

    key = jax.random.PRNGKey(0)
    k_params, k_x = jax.random.split(key)
    ks = jax.random.split(k_params, 7)

    params = {
        "x_encoder": _init_mlp(ks[0], [input_dim] + hidden_dims + [latent_dim]),
        "x_decoder": _init_mlp(ks[1], [latent_dim] + hidden_dims + [input_dim]),
        "latent_action": _init_mlp(ks[2], [2 * latent_dim, 256, 256, 256, vq_dim]),
        "a_decoder": _init_mlp(ks[3], [vq_dim + input_dim, 256, 256, action_dim]),
        "latent_dynamics": _init_mlp(
            ks[4], [vq_dim + latent_dim] + hidden_dims + [latent_dim]),
        "fsq_project_in": _init_mlp(ks[5], [vq_dim, code_dim]),
        "fsq_project_out": _init_mlp(ks[6], [code_dim, vq_dim]),
    }

    slabs, layout = pack_model(params, levels, num_codebooks, latent_dim, vq_dim)
    fwd = jax.jit(make_forward(layout, B=B, T=T, input_dim=input_dim,
                               latent_dim=latent_dim, action_dim=action_dim,
                               code_dim=code_dim))

    x = jax.random.normal(k_x, (B, T, input_dim), jnp.float32)
    x_recon, a_pred, zx, pred_zx_prime = fwd(slabs, x)
    jax.block_until_ready((x_recon, a_pred, zx, pred_zx_prime))

    assert x_recon.shape == (B, T, input_dim)
    assert a_pred.shape == (B, T - 2, action_dim)
    assert zx.shape == (B, T, latent_dim)
    assert pred_zx_prime.shape == (B, T - 2, latent_dim)
    assert bool(jnp.isfinite(x_recon).all() & jnp.isfinite(a_pred).all()
                & jnp.isfinite(zx).all() & jnp.isfinite(pred_zx_prime).all())
    print("KERNEL_OK")
</pallas_src>

<mosaic_0001>
module attributes {stable_mosaic.version = 11 : i64} {
  func.func @kernel(%arg0: memref<16x16xf32, #tpu.memory_space<vmem>>, %arg1: memref<2x8xf32, #tpu.memory_space<vmem>>, %arg2: memref<3x256x256xbf16, #tpu.memory_space<vmem>>, %arg3: memref<48x256xbf16, #tpu.memory_space<vmem>>, %arg4: memref<752x128xbf16, #tpu.memory_space<vmem>>, %arg5: memref<24x16xf32, #tpu.memory_space<vmem>>, %arg6: memref<18x256xf32, #tpu.memory_space<vmem>>, %arg7: memref<16x30xf32, #tpu.memory_space<vmem>>) attributes {dimension_semantics = [], scalar_prefetch = 0 : i64, scratch_operands = 0 : i64, tpu.core_type = #tpu.core_type<tc>} {
    %c0 = arith.constant 0 : index
    %c0_0 = arith.constant 0 : index
    %0 = vector.load %arg0[%c0, %c0_0] : memref<16x16xf32, #tpu.memory_space<vmem>>, vector<16x16xf32>
    %1 = arith.truncf %0 : vector<16x16xf32> to vector<16x16xbf16>
    %c0_1 = arith.constant 0 : index
    %c0_2 = arith.constant 0 : index
    %2 = vector.load %arg4[%c0_1, %c0_2] : memref<752x128xbf16, #tpu.memory_space<vmem>>, vector<16x32xbf16>
    %cst = arith.constant dense<0.000000e+00> : vector<16x32xf32>
    %3 = tpu.matmul %1, %2, %cst {dimension_numbers = #tpu.dot_dimension_numbers<[1], [0], [0], [1], [0, 0, 1, 1], [], []>} : vector<16x16xbf16>, vector<16x32xbf16>, vector<16x32xf32> -> vector<16x32xf32>
    %c0_3 = arith.constant 0 : index
    %c0_4 = arith.constant 0 : index
    %4 = vector.load %arg6[%c0_3, %c0_4] : memref<18x256xf32, #tpu.memory_space<vmem>>, vector<1x32xf32>
    %5 = vector.broadcast %4 : vector<1x32xf32> to vector<16x32xf32>
    %6 = arith.addf %3, %5 : vector<16x32xf32>
    %cst_5 = arith.constant 0.000000e+00 : f32
    %7 = vector.broadcast %cst_5 : f32 to vector<16x32xf32>
    %8 = arith.maximumf %6, %7 : vector<16x32xf32>
    %c16 = arith.constant 16 : index
    %c0_6 = arith.constant 0 : index
    %9 = vector.load %arg4[%c16, %c0_6] : memref<752x128xbf16, #tpu.memory_space<vmem>>, vector<32x32xbf16>
    %10 = arith.truncf %8 : vector<16x32xf32> to vector<16x32xbf16>
    %cst_7 = arith.constant dense<0.000000e+00> : vector<16x32xf32>
    %11 = tpu.matmul %10, %9, %cst_7 {dimension_numbers = #tpu.dot_dimension_numbers<[1], [0], [0], [1], [0, 0, 1, 1], [], []>} : vector<16x32xbf16>, vector<32x32xbf16>, vector<16x32xf32> -> vector<16x32xf32>
    %c1 = arith.constant 1 : index
    %c0_8 = arith.constant 0 : index
    %12 = vector.load %arg6[%c1, %c0_8] : memref<18x256xf32, #tpu.memory_space<vmem>>, vector<1x32xf32>
    %13 = vector.broadcast %12 : vector<1x32xf32> to vector<16x32xf32>
    %14 = arith.addf %11, %13 : vector<16x32xf32>
    %cst_9 = arith.constant 0.000000e+00 : f32
    %15 = vector.broadcast %cst_9 : f32 to vector<16x32xf32>
    %16 = arith.maximumf %14, %15 : vector<16x32xf32>
    %c48 = arith.constant 48 : index
    %c0_10 = arith.constant 0 : index
    %17 = vector.load %arg4[%c48, %c0_10] : memref<752x128xbf16, #tpu.memory_space<vmem>>, vector<32x4xbf16>
    %18 = arith.truncf %16 : vector<16x32xf32> to vector<16x32xbf16>
    %cst_11 = arith.constant dense<0.000000e+00> : vector<16x4xf32>
    %19 = tpu.matmul %18, %17, %cst_11 {dimension_numbers = #tpu.dot_dimension_numbers<[1], [0], [0], [1], [0, 0, 1, 1], [], []>} : vector<16x32xbf16>, vector<32x4xbf16>, vector<16x4xf32> -> vector<16x4xf32>
    %c2 = arith.constant 2 : index
    %c0_12 = arith.constant 0 : index
    %20 = vector.load %arg6[%c2, %c0_12] : memref<18x256xf32, #tpu.memory_space<vmem>>, vector<1x4xf32>
    %21 = vector.broadcast %20 : vector<1x4xf32> to vector<16x4xf32>
    %22 = arith.addf %19, %21 : vector<16x4xf32>
    %23 = arith.truncf %22 : vector<16x4xf32> to vector<16x4xbf16>
    %c80 = arith.constant 80 : index
    %c0_13 = arith.constant 0 : index
    %24 = vector.load %arg4[%c80, %c0_13] : memref<752x128xbf16, #tpu.memory_space<vmem>>, vector<4x32xbf16>
    %cst_14 = arith.constant dense<0.000000e+00> : vector<16x32xf32>
    %25 = tpu.matmul %23, %24, %cst_14 {dimension_numbers = #tpu.dot_dimension_numbers<[1], [0], [0], [1], [0, 0, 1, 1], [], []>} : vector<16x4xbf16>, vector<4x32xbf16>, vector<16x32xf32> -> vector<16x32xf32>
    %c3 = arith.constant 3 : index
    %c0_15 = arith.constant 0 : index
    %26 = vector.load %arg6[%c3, %c0_15] : memref<18x256xf32, #tpu.memory_space<vmem>>, vector<1x32xf32>
    %27 = vector.broadcast %26 : vector<1x32xf32> to vector<16x32xf32>
    %28 = arith.addf %25, %27 : vector<16x32xf32>
    %cst_16 = arith.constant 0.000000e+00 : f32
    %29 = vector.broadcast %cst_16 : f32 to vector<16x32xf32>
    %30 = arith.maximumf %28, %29 : vector<16x32xf32>
    %c88 = arith.constant 88 : index
    %c0_17 = arith.constant 0 : index
    %31 = vector.load %arg4[%c88, %c0_17] : memref<752x128xbf16, #tpu.memory_space<vmem>>, vector<32x32xbf16>
    %32 = arith.truncf %30 : vector<16x32xf32> to vector<16x32xbf16>
    %cst_18 = arith.constant dense<0.000000e+00> : vector<16x32xf32>
    %33 = tpu.matmul %32, %31, %cst_18 {dimension_numbers = #tpu.dot_dimension_numbers<[1], [0], [0], [1], [0, 0, 1, 1], [], []>} : vector<16x32xbf16>, vector<32x32xbf16>, vector<16x32xf32> -> vector<16x32xf32>
    %c4 = arith.constant 4 : index
    %c0_19 = arith.constant 0 : index
    %34 = vector.load %arg6[%c4, %c0_19] : memref<18x256xf32, #tpu.memory_space<vmem>>, vector<1x32xf32>
    %35 = vector.broadcast %34 : vector<1x32xf32> to vector<16x32xf32>
    %36 = arith.addf %33, %35 : vector<16x32xf32>
    %cst_20 = arith.constant 0.000000e+00 : f32
    %37 = vector.broadcast %cst_20 : f32 to vector<16x32xf32>
    %38 = arith.maximumf %36, %37 : vector<16x32xf32>
    %c120 = arith.constant 120 : index
    %c0_21 = arith.constant 0 : index
    %39 = vector.load %arg4[%c120, %c0_21] : memref<752x128xbf16, #tpu.memory_space<vmem>>, vector<32x16xbf16>
    %40 = arith.truncf %38 : vector<16x32xf32> to vector<16x32xbf16>
    %cst_22 = arith.constant dense<0.000000e+00> : vector<16x16xf32>
    %41 = tpu.matmul %40, %39, %cst_22 {dimension_numbers = #tpu.dot_dimension_numbers<[1], [0], [0], [1], [0, 0, 1, 1], [], []>} : vector<16x32xbf16>, vector<32x16xbf16>, vector<16x16xf32> -> vector<16x16xf32>
    %c5 = arith.constant 5 : index
    %c0_23 = arith.constant 0 : index
    %42 = vector.load %arg6[%c5, %c0_23] : memref<18x256xf32, #tpu.memory_space<vmem>>, vector<1x16xf32>
    %43 = vector.broadcast %42 : vector<1x16xf32> to vector<16x16xf32>
    %44 = arith.addf %41, %43 : vector<16x16xf32>
    %c14_i32 = arith.constant 14 : i32
    %45 = tpu.dynamic_rotate %22 by %c14_i32 dim 0 : vector<16x4xf32>, i32 -> vector<16x4xf32>
    %46 = arith.truncf %45 : vector<16x4xf32> to vector<16x4xbf16>
    %c15_i32 = arith.constant 15 : i32
    %47 = tpu.dynamic_rotate %22 by %c15_i32 dim 0 : vector<16x4xf32>, i32 -> vector<16x4xf32>
    %48 = arith.truncf %47 : vector<16x4xf32> to vector<16x4xbf16>
    %c15_i32_24 = arith.constant 15 : i32
    %49 = tpu.dynamic_rotate %0 by %c15_i32_24 dim 0 : vector<16x16xf32>, i32 -> vector<16x16xf32>
    %50 = arith.truncf %49 : vector<16x16xf32> to vector<16x16xbf16>
    %c0_25 = arith.constant 0 : index
    %c0_26 = arith.constant 0 : index
    %51 = vector.load %arg3[%c0_25, %c0_26] : memref<48x256xbf16, #tpu.memory_space<vmem>>, vector<4x256xbf16>
    %c8 = arith.constant 8 : index
    %c0_27 = arith.constant 0 : index
    %52 = vector.load %arg3[%c8, %c0_27] : memref<48x256xbf16, #tpu.memory_space<vmem>>, vector<4x256xbf16>
    %cst_28 = arith.constant dense<0.000000e+00> : vector<16x256xf32>
    %53 = tpu.matmul %23, %51, %cst_28 {dimension_numbers = #tpu.dot_dimension_numbers<[1], [0], [0], [1], [0, 0, 1, 1], [], []>} : vector<16x4xbf16>, vector<4x256xbf16>, vector<16x256xf32> -> vector<16x256xf32>
    %cst_29 = arith.constant dense<0.000000e+00> : vector<16x256xf32>
    %54 = tpu.matmul %46, %52, %cst_29 {dimension_numbers = #tpu.dot_dimension_numbers<[1], [0], [0], [1], [0, 0, 1, 1], [], []>} : vector<16x4xbf16>, vector<4x256xbf16>, vector<16x256xf32> -> vector<16x256xf32>
    %55 = arith.addf %53, %54 : vector<16x256xf32>
    %c6 = arith.constant 6 : index
    %c0_30 = arith.constant 0 : index
    %56 = vector.load %arg6[%c6, %c0_30] : memref<18x256xf32, #tpu.memory_space<vmem>>, vector<1x256xf32>
    %57 = vector.broadcast %56 : vector<1x256xf32> to vector<16x256xf32>
    %58 = arith.addf %55, %57 : vector<16x256xf32>
    %cst_31 = arith.constant 0.000000e+00 : f32
    %59 = vector.broadcast %cst_31 : f32 to vector<16x256xf32>
    %60 = arith.maximumf %58, %59 : vector<16x256xf32>
    %c0_32 = arith.constant 0 : index
    %c0_33 = arith.constant 0 : index
    %c0_34 = arith.constant 0 : index
    %61 = vector.load %arg2[%c0_32, %c0_33, %c0_34] : memref<3x256x256xbf16, #tpu.memory_space<vmem>>, vector<1x256x256xbf16>
    %62 = vector.shape_cast %61 : vector<1x256x256xbf16> to vector<256x256xbf16>
    %63 = arith.truncf %60 : vector<16x256xf32> to vector<16x256xbf16>
    %cst_35 = arith.constant dense<0.000000e+00> : vector<16x256xf32>
    %64 = tpu.matmul %63, %62, %cst_35 {dimension_numbers = #tpu.dot_dimension_numbers<[1], [0], [0], [1], [0, 0, 1, 1], [], []>} : vector<16x256xbf16>, vector<256x256xbf16>, vector<16x256xf32> -> vector<16x256xf32>
    %c7 = arith.constant 7 : index
    %c0_36 = arith.constant 0 : index
    %65 = vector.load %arg6[%c7, %c0_36] : memref<18x256xf32, #tpu.memory_space<vmem>>, vector<1x256xf32>
    %66 = vector.broadcast %65 : vector<1x256xf32> to vector<16x256xf32>
    %67 = arith.addf %64, %66 : vector<16x256xf32>
    %cst_37 = arith.constant 0.000000e+00 : f32
    %68 = vector.broadcast %cst_37 : f32 to vector<16x256xf32>
    %69 = arith.maximumf %67, %68 : vector<16x256xf32>
    %c1_38 = arith.constant 1 : index
    %c0_39 = arith.constant 0 : index
    %c0_40 = arith.constant 0 : index
    %70 = vector.load %arg2[%c1_38, %c0_39, %c0_40] : memref<3x256x256xbf16, #tpu.memory_space<vmem>>, vector<1x256x256xbf16>
    %71 = vector.shape_cast %70 : vector<1x256x256xbf16> to vector<256x256xbf16>
    %72 = arith.truncf %69 : vector<16x256xf32> to vector<16x256xbf16>
    %cst_41 = arith.constant dense<0.000000e+00> : vector<16x256xf32>
    %73 = tpu.matmul %72, %71, %cst_41 {dimension_numbers = #tpu.dot_dimension_numbers<[1], [0], [0], [1], [0, 0, 1, 1], [], []>} : vector<16x256xbf16>, vector<256x256xbf16>, vector<16x256xf32> -> vector<16x256xf32>
    %c8_42 = arith.constant 8 : index
    %c0_43 = arith.constant 0 : index
    %74 = vector.load %arg6[%c8_42, %c0_43] : memref<18x256xf32, #tpu.memory_space<vmem>>, vector<1x256xf32>
    %75 = vector.broadcast %74 : vector<1x256xf32> to vector<16x256xf32>
    %76 = arith.addf %73, %75 : vector<16x256xf32>
    %cst_44 = arith.constant 0.000000e+00 : f32
    %77 = vector.broadcast %cst_44 : f32 to vector<16x256xf32>
    %78 = arith.maximumf %76, %77 : vector<16x256xf32>
    %c152 = arith.constant 152 : index
    %c0_45 = arith.constant 0 : index
    %79 = vector.load %arg4[%c152, %c0_45] : memref<752x128xbf16, #tpu.memory_space<vmem>>, vector<256x16xbf16>
    %80 = arith.truncf %78 : vector<16x256xf32> to vector<16x256xbf16>
    %cst_46 = arith.constant dense<0.000000e+00> : vector<16x16xf32>
    %81 = tpu.matmul %80, %79, %cst_46 {dimension_numbers = #tpu.dot_dimension_numbers<[1], [0], [0], [1], [0, 0, 1, 1], [], []>} : vector<16x256xbf16>, vector<256x16xbf16>, vector<16x16xf32> -> vector<16x16xf32>
    %c9 = arith.constant 9 : index
    %c0_47 = arith.constant 0 : index
    %82 = vector.load %arg6[%c9, %c0_47] : memref<18x256xf32, #tpu.memory_space<vmem>>, vector<1x16xf32>
    %83 = vector.broadcast %82 : vector<1x16xf32> to vector<16x16xf32>
    %84 = arith.addf %81, %83 : vector<16x16xf32>
    %c0_48 = arith.constant 0 : index
    %c0_49 = arith.constant 0 : index
    %85 = vector.load %arg1[%c0_48, %c0_49] : memref<2x8xf32, #tpu.memory_space<vmem>>, vector<1x8xf32>
    %c1_50 = arith.constant 1 : index
    %c0_51 = arith.constant 0 : index
    %86 = vector.load %arg1[%c1_50, %c0_51] : memref<2x8xf32, #tpu.memory_space<vmem>>, vector<1x8xf32>
    %c0_52 = arith.constant 0 : index
    %c0_53 = arith.constant 0 : index
    %87 = vector.load %arg5[%c0_52, %c0_53] : memref<24x16xf32, #tpu.memory_space<vmem>>, vector<16x8xf32>
    %cst_54 = arith.constant dense<0.000000e+00> : vector<16x8xf32>
    %88 = tpu.matmul %84, %87, %cst_54 {dimension_numbers = #tpu.dot_dimension_numbers<[1], [0], [0], [1], [0, 0, 1, 1], [], []>} : vector<16x16xf32>, vector<16x8xf32>, vector<16x8xf32> -> vector<16x8xf32>
    %c10 = arith.constant 10 : index
    %c0_55 = arith.constant 0 : index
    %89 = vector.load %arg6[%c10, %c0_55] : memref<18x256xf32, #tpu.memory_space<vmem>>, vector<1x8xf32>
    %90 = vector.broadcast %89 : vector<1x8xf32> to vector<16x8xf32>
    %91 = arith.addf %88, %90 : vector<16x8xf32>
    %92 = math.tanh %91 : vector<16x8xf32>
    %93 = vector.broadcast %85 : vector<1x8xf32> to vector<16x8xf32>
    %94 = arith.mulf %92, %93 : vector<16x8xf32>
    %95 = vector.broadcast %86 : vector<1x8xf32> to vector<16x8xf32>
    %96 = arith.subf %94, %95 : vector<16x8xf32>
    %97 = math.roundeven %96 : vector<16x8xf32>
    %c16_56 = arith.constant 16 : index
    %c0_57 = arith.constant 0 : index
    %98 = vector.load %arg5[%c16_56, %c0_57] : memref<24x16xf32, #tpu.memory_space<vmem>>, vector<8x16xf32>
    %cst_58 = arith.constant dense<0.000000e+00> : vector<16x16xf32>
    %99 = tpu.matmul %97, %98, %cst_58 {dimension_numbers = #tpu.dot_dimension_numbers<[1], [0], [0], [1], [0, 0, 1, 1], [], []>} : vector<16x8xf32>, vector<8x16xf32>, vector<16x16xf32> -> vector<16x16xf32>
    %c11 = arith.constant 11 : index
    %c0_59 = arith.constant 0 : index
    %100 = vector.load %arg6[%c11, %c0_59] : memref<18x256xf32, #tpu.memory_space<vmem>>, vector<1x16xf32>
    %101 = vector.broadcast %100 : vector<1x16xf32> to vector<16x16xf32>
    %102 = arith.addf %99, %101 : vector<16x16xf32>
    %103 = arith.truncf %102 : vector<16x16xf32> to vector<16x16xbf16>
    %c408 = arith.constant 408 : index
    %c0_60 = arith.constant 0 : index
    %104 = vector.load %arg4[%c408, %c0_60] : memref<752x128xbf16, #tpu.memory_space<vmem>>, vector<16x32xbf16>
    %c424 = arith.constant 424 : index
    %c0_61 = arith.constant 0 : index
    %105 = vector.load %arg4[%c424, %c0_61] : memref<752x128xbf16, #tpu.memory_space<vmem>>, vector<4x32xbf16>
    %cst_62 = arith.constant dense<0.000000e+00> : vector<16x32xf32>
    %106 = tpu.matmul %103, %104, %cst_62 {dimension_numbers = #tpu.dot_dimension_numbers<[1], [0], [0], [1], [0, 0, 1, 1], [], []>} : vector<16x16xbf16>, vector<16x32xbf16>, vector<16x32xf32> -> vector<16x32xf32>
    %cst_63 = arith.constant dense<0.000000e+00> : vector<16x32xf32>
    %107 = tpu.matmul %48, %105, %cst_63 {dimension_numbers = #tpu.dot_dimension_numbers<[1], [0], [0], [1], [0, 0, 1, 1], [], []>} : vector<16x4xbf16>, vector<4x32xbf16>, vector<16x32xf32> -> vector<16x32xf32>
    %108 = arith.addf %106, %107 : vector<16x32xf32>
    %c12 = arith.constant 12 : index
    %c0_64 = arith.constant 0 : index
    %109 = vector.load %arg6[%c12, %c0_64] : memref<18x256xf32, #tpu.memory_space<vmem>>, vector<1x32xf32>
    %110 = vector.broadcast %109 : vector<1x32xf32> to vector<16x32xf32>
    %111 = arith.addf %108, %110 : vector<16x32xf32>
    %cst_65 = arith.constant 0.000000e+00 : f32
    %112 = vector.broadcast %cst_65 : f32 to vector<16x32xf32>
    %113 = arith.maximumf %111, %112 : vector<16x32xf32>
    %c432 = arith.constant 432 : index
    %c0_66 = arith.constant 0 : index
    %114 = vector.load %arg4[%c432, %c0_66] : memref<752x128xbf16, #tpu.memory_space<vmem>>, vector<32x32xbf16>
    %115 = arith.truncf %113 : vector<16x32xf32> to vector<16x32xbf16>
    %cst_67 = arith.constant dense<0.000000e+00> : vector<16x32xf32>
    %116 = tpu.matmul %115, %114, %cst_67 {dimension_numbers = #tpu.dot_dimension_numbers<[1], [0], [0], [1], [0, 0, 1, 1], [], []>} : vector<16x32xbf16>, vector<32x32xbf16>, vector<16x32xf32> -> vector<16x32xf32>
    %c13 = arith.constant 13 : index
    %c0_68 = arith.constant 0 : index
    %117 = vector.load %arg6[%c13, %c0_68] : memref<18x256xf32, #tpu.memory_space<vmem>>, vector<1x32xf32>
    %118 = vector.broadcast %117 : vector<1x32xf32> to vector<16x32xf32>
    %119 = arith.addf %116, %118 : vector<16x32xf32>
    %cst_69 = arith.constant 0.000000e+00 : f32
    %120 = vector.broadcast %cst_69 : f32 to vector<16x32xf32>
    %121 = arith.maximumf %119, %120 : vector<16x32xf32>
    %c464 = arith.constant 464 : index
    %c0_70 = arith.constant 0 : index
    %122 = vector.load %arg4[%c464, %c0_70] : memref<752x128xbf16, #tpu.memory_space<vmem>>, vector<32x4xbf16>
    %123 = arith.truncf %121 : vector<16x32xf32> to vector<16x32xbf16>
    %cst_71 = arith.constant dense<0.000000e+00> : vector<16x4xf32>
    %124 = tpu.matmul %123, %122, %cst_71 {dimension_numbers = #tpu.dot_dimension_numbers<[1], [0], [0], [1], [0, 0, 1, 1], [], []>} : vector<16x32xbf16>, vector<32x4xbf16>, vector<16x4xf32> -> vector<16x4xf32>
    %c14 = arith.constant 14 : index
    %c0_72 = arith.constant 0 : index
    %125 = vector.load %arg6[%c14, %c0_72] : memref<18x256xf32, #tpu.memory_space<vmem>>, vector<1x4xf32>
    %126 = vector.broadcast %125 : vector<1x4xf32> to vector<16x4xf32>
    %127 = arith.addf %124, %126 : vector<16x4xf32>
    %c16_73 = arith.constant 16 : index
    %c0_74 = arith.constant 0 : index
    %128 = vector.load %arg3[%c16_73, %c0_74] : memref<48x256xbf16, #tpu.memory_space<vmem>>, vector<16x256xbf16>
    %c32 = arith.constant 32 : index
    %c0_75 = arith.constant 0 : index
    %129 = vector.load %arg3[%c32, %c0_75] : memref<48x256xbf16, #tpu.memory_space<vmem>>, vector<16x256xbf16>
    %cst_76 = arith.constant dense<0.000000e+00> : vector<16x256xf32>
    %130 = tpu.matmul %103, %128, %cst_76 {dimension_numbers = #tpu.dot_dimension_numbers<[1], [0], [0], [1], [0, 0, 1, 1], [], []>} : vector<16x16xbf16>, vector<16x256xbf16>, vector<16x256xf32> -> vector<16x256xf32>
    %cst_77 = arith.constant dense<0.000000e+00> : vector<16x256xf32>
    %131 = tpu.matmul %50, %129, %cst_77 {dimension_numbers = #tpu.dot_dimension_numbers<[1], [0], [0], [1], [0, 0, 1, 1], [], []>} : vector<16x16xbf16>, vector<16x256xbf16>, vector<16x256xf32> -> vector<16x256xf32>
    %132 = arith.addf %130, %131 : vector<16x256xf32>
    %c15 = arith.constant 15 : index
    %c0_78 = arith.constant 0 : index
    %133 = vector.load %arg6[%c15, %c0_78] : memref<18x256xf32, #tpu.memory_space<vmem>>, vector<1x256xf32>
    %134 = vector.broadcast %133 : vector<1x256xf32> to vector<16x256xf32>
    %135 = arith.addf %132, %134 : vector<16x256xf32>
    %cst_79 = arith.constant 0.000000e+00 : f32
    %136 = vector.broadcast %cst_79 : f32 to vector<16x256xf32>
    %137 = arith.maximumf %135, %136 : vector<16x256xf32>
    %c2_80 = arith.constant 2 : index
    %c0_81 = arith.constant 0 : index
    %c0_82 = arith.constant 0 : index
    %138 = vector.load %arg2[%c2_80, %c0_81, %c0_82] : memref<3x256x256xbf16, #tpu.memory_space<vmem>>, vector<1x256x256xbf16>
    %139 = vector.shape_cast %138 : vector<1x256x256xbf16> to vector<256x256xbf16>
    %140 = arith.truncf %137 : vector<16x256xf32> to vector<16x256xbf16>
    %cst_83 = arith.constant dense<0.000000e+00> : vector<16x256xf32>
    %141 = tpu.matmul %140, %139, %cst_83 {dimension_numbers = #tpu.dot_dimension_numbers<[1], [0], [0], [1], [0, 0, 1, 1], [], []>} : vector<16x256xbf16>, vector<256x256xbf16>, vector<16x256xf32> -> vector<16x256xf32>
    %c16_84 = arith.constant 16 : index
    %c0_85 = arith.constant 0 : index
    %142 = vector.load %arg6[%c16_84, %c0_85] : memref<18x256xf32, #tpu.memory_space<vmem>>, vector<1x256xf32>
    %143 = vector.broadcast %142 : vector<1x256xf32> to vector<16x256xf32>
    %144 = arith.addf %141, %143 : vector<16x256xf32>
    %cst_86 = arith.constant 0.000000e+00 : f32
    %145 = vector.broadcast %cst_86 : f32 to vector<16x256xf32>
    %146 = arith.maximumf %144, %145 : vector<16x256xf32>
    %c496 = arith.constant 496 : index
    %c0_87 = arith.constant 0 : index
    %147 = vector.load %arg4[%c496, %c0_87] : memref<752x128xbf16, #tpu.memory_space<vmem>>, vector<256x6xbf16>
    %148 = arith.truncf %146 : vector<16x256xf32> to vector<16x256xbf16>
    %cst_88 = arith.constant dense<0.000000e+00> : vector<16x6xf32>
    %149 = tpu.matmul %148, %147, %cst_88 {dimension_numbers = #tpu.dot_dimension_numbers<[1], [0], [0], [1], [0, 0, 1, 1], [], []>} : vector<16x256xbf16>, vector<256x6xbf16>, vector<16x6xf32> -> vector<16x6xf32>
    %c17 = arith.constant 17 : index
    %c0_89 = arith.constant 0 : index
    %150 = vector.load %arg6[%c17, %c0_89] : memref<18x256xf32, #tpu.memory_space<vmem>>, vector<1x6xf32>
    %151 = vector.broadcast %150 : vector<1x6xf32> to vector<16x6xf32>
    %152 = arith.addf %149, %151 : vector<16x6xf32>
    %c0_90 = arith.constant 0 : index
    %c0_91 = arith.constant 0 : index
    %153 = vector.load %arg7[%c0_90, %c0_91] : memref<16x30xf32, #tpu.memory_space<vmem>>, vector<16x16xf32>
    tpu.vector_store %arg7[%c0_90, %c0_91], %44 {strides = array<i32>} : memref<16x30xf32, #tpu.memory_space<vmem>>, vector<16x16xf32>,
    %c0_92 = arith.constant 0 : index
    %c16_93 = arith.constant 16 : index
    %154 = vector.load %arg7[%c0_92, %c16_93] : memref<16x30xf32, #tpu.memory_space<vmem>>, vector<16x4xf32>
    tpu.vector_store %arg7[%c0_92, %c16_93], %22 {strides = array<i32>} : memref<16x30xf32, #tpu.memory_space<vmem>>, vector<16x4xf32>,
    %c0_94 = arith.constant 0 : index
    %c20 = arith.constant 20 : index
    %155 = vector.load %arg7[%c0_94, %c20] : memref<16x30xf32, #tpu.memory_space<vmem>>, vector<16x4xf32>
    tpu.vector_store %arg7[%c0_94, %c20], %127 {strides = array<i32>} : memref<16x30xf32, #tpu.memory_space<vmem>>, vector<16x4xf32>,
    %c0_95 = arith.constant 0 : index
    %c24 = arith.constant 24 : index
    %156 = vector.load %arg7[%c0_95, %c24] : memref<16x30xf32, #tpu.memory_space<vmem>>, vector<16x6xf32>
    tpu.vector_store %arg7[%c0_95, %c24], %152 {strides = array<i32>} : memref<16x30xf32, #tpu.memory_space<vmem>>, vector<16x6xf32>,
    return
  }
}

</mosaic_0001>

<llo_original>
// kernel: forward.1
$region0: #{forward.1}
  #allocation0 [shape = 'u32[]', space=smem, size = 0x4, offset = 0x4, fixed_abs, tag = 'smem constant byte address 0x4 - core index']
  #allocation1 [shape = 'u32[144,128]{1,0:T(1,128)}', space=vmem, size = 0x12000, scoped, tag = 'internal scratch']
  %s0 = inlined_call_operand.hbm [shape: f32[16,16], index: 0, kind: input, shape index: {}]
  %s1 = inlined_call_operand.vmem [shape: f32[2,8], index: 1, kind: input, shape index: {}]
  %s2 = inlined_call_operand.hbm [shape: bf16[3,256,256], index: 2, kind: input, shape index: {}]
  %s3 = inlined_call_operand.hbm [shape: bf16[48,256], index: 3, kind: input, shape index: {}]
  %s4 = inlined_call_operand.hbm [shape: bf16[752,128], index: 4, kind: input, shape index: {}]
  %s5 = inlined_call_operand.vmem [shape: f32[24,16], index: 5, kind: input, shape index: {}]
  %s6 = inlined_call_operand.vmem [shape: f32[18,256], index: 6, kind: input, shape index: {}]
  %s7 = inlined_call_operand.vmem [shape: f32[16,30], index: 7, kind: output, shape index: {}]
  %s8 = sld [smem:[#allocation0]]
  $region54: #{forward.1} parent=0
    _
  %s10 = ssub.s32 1, %s8
  %s11 = scalar_select 0, %s10, %s8
  $region1: #{forward.1} parent=0
    #allocation2 [shape = 'u8[8192]{0}', space=vmem, size = 0x2000, scoped, tag = 'input window, operand 0, single buffered']
    #allocation3 [shape = 's32[1]{0}', space=sflag, size = 0x4, scoped, tag = 'scoped memory for forward.1']
    #allocation4 [shape = 'u8[393216]{0}', space=vmem, size = 0x60000, scoped, tag = 'input window, operand 2, single buffered']
    #allocation5 [shape = 's32[1]{0}', space=sflag, size = 0x4, scoped, tag = 'scoped memory for forward.1']
    #allocation6 [shape = 'u8[24576]{0}', space=vmem, size = 0x6000, scoped, tag = 'input window, operand 3, single buffered']
    #allocation7 [shape = 'u8[192512]{0}', space=vmem, size = 0x2f000, scoped, tag = 'input window, operand 4, single buffered']
    #allocation8 [shape = 's32[1]{0}', space=sflag, size = 0x4, scoped, tag = 'scoped memory for forward.1']
    %12 = vsyncpa [#allocation3], 0
    %13 = vsyncpa [#allocation5], 0
    %14 = vsyncpa [#allocation8], 0
    // Predicated region
    $region2: #{forward.1} parent=1 // pred_check
      _
    $region3: #{forward.1} parent=1 // pred_check_branch
      %16 = sbr.rel (0) target = $region5
    $region4: #{forward.1} parent=1 // pred_region
      %s18 = ssub.s32 256, 256
      %19 = vsyncadd [#allocation3], %s18
      %s20 = sshll.u32 [#allocation2], 4
      %s21 = int_to_ptr.vmem [resolvable:$true] %s20
      %26 = dma.hbm_to_vmem [thread:$0]  %s0, 256, %s21, [#allocation3], 128, 128, 8
    $region5: #{forward.1} parent=1 // pred_fallthru
      _
    // Predicated region
    $region6: #{forward.1} parent=1 // pred_check
      _
    $region7: #{forward.1} parent=1 // pred_check_branch
      %28 = sbr.rel (0) target = $region9
    $region8: #{forward.1} parent=1 // pred_region
      _
    $region9: #{forward.1} parent=1 // pred_fallthru
      _
    // Predicated region
    $region10: #{forward.1} parent=1 // pred_check
      _
    $region11: #{forward.1} parent=1 // pred_check_branch
      %30 = sbr.rel (0) target = $region13
    $region12: #{forward.1} parent=1 // pred_region
      %s32 = ssub.s32 12288, 12288
      %33 = vsyncadd [#allocation5], %s32
      %s34 = sshll.u32 [#allocation4], 4
      %s35 = int_to_ptr.vmem [resolvable:$true] %s34
      %40 = dma.hbm_to_vmem [thread:$0]  %s2, 12288, %s35, [#allocation5], 128, 128, 8
    $region13: #{forward.1} parent=1 // pred_fallthru
      _
    // Predicated region
    $region14: #{forward.1} parent=1 // pred_check
      _
    $region15: #{forward.1} parent=1 // pred_check_branch
      %42 = sbr.rel (0) target = $region17
    $region16: #{forward.1} parent=1 // pred_region
      %s44 = ssub.s32 768, 768
      %45 = vsyncadd [#allocation5], %s44
      %s46 = sshll.u32 [#allocation6], 4
      %s47 = int_to_ptr.vmem [resolvable:$true] %s46
      %52 = dma.hbm_to_vmem [thread:$0]  %s3, 768, %s47, [#allocation5], 128, 128, 8
    $region17: #{forward.1} parent=1 // pred_fallthru
      _
    // Predicated region
    $region18: #{forward.1} parent=1 // pred_check
      _
    $region19: #{forward.1} parent=1 // pred_check_branch
      %54 = sbr.rel (0) target = $region21
    $region20: #{forward.1} parent=1 // pred_region
      %s56 = ssub.s32 6016, 6016
      %57 = vsyncadd [#allocation8], %s56
      %s58 = sshll.u32 [#allocation7], 4
      %s59 = int_to_ptr.vmem [resolvable:$true] %s58
      %64 = dma.hbm_to_vmem [thread:$0]  %s4, 6016, %s59, [#allocation8], 64, 64, 4
    $region21: #{forward.1} parent=1 // pred_fallthru
      _
    // Predicated region
    $region22: #{forward.1} parent=1 // pred_check
      _
    $region23: #{forward.1} parent=1 // pred_check_branch
      %66 = sbr.rel (0) target = $region25
    $region24: #{forward.1} parent=1 // pred_region
      _
    $region25: #{forward.1} parent=1 // pred_fallthru
      _
    // Predicated region
    $region26: #{forward.1} parent=1 // pred_check
      _
    $region27: #{forward.1} parent=1 // pred_check_branch
      %68 = sbr.rel (0) target = $region29
    $region28: #{forward.1} parent=1 // pred_region
      _
    $region29: #{forward.1} parent=1 // pred_fallthru
      _
    // Predicated region
    $region30: #{forward.1} parent=1 // pred_check
      _
    $region31: #{forward.1} parent=1 // pred_check_branch
      %70 = sbr.rel (0) target = $region33
    $region32: #{forward.1} parent=1 // pred_region
      %71 = dma.done [#allocation3], 256
    $region33: #{forward.1} parent=1 // pred_fallthru
      _
    // Predicated region
    $region34: #{forward.1} parent=1 // pred_check
      _
    $region35: #{forward.1} parent=1 // pred_check_branch
      %73 = sbr.rel (0) target = $region37
    $region36: #{forward.1} parent=1 // pred_region
      %74 = dma.done [#allocation5], 12288
    $region37: #{forward.1} parent=1 // pred_fallthru
      _
    // Predicated region
    $region38: #{forward.1} parent=1 // pred_check
      _
    $region39: #{forward.1} parent=1 // pred_check_branch
      %76 = sbr.rel (0) target = $region41
    $region40: #{forward.1} parent=1 // pred_region
      %77 = dma.done [#allocation5], 768
    $region41: #{forward.1} parent=1 // pred_fallthru
      _
    // Predicated region
    $region42: #{forward.1} parent=1 // pred_check
      _
    $region43: #{forward.1} parent=1 // pred_check_branch
      %79 = sbr.rel (0) target = $region45
    $region44: #{forward.1} parent=1 // pred_region
      %80 = dma.done [#allocation8], 6016
    $region45: #{forward.1} parent=1 // pred_fallthru
      _
    %v82 = vld [vmem:[#allocation2] sm:$0xff]
    %v83 = vld [vmem:[#allocation2 + $0x8] sm:$0xff]
    %v84 = vpack.c.bf16 %v83, %v82
    %v85 = vld [vmem:[#allocation7] sm:$0xf]
    %v86 = vld [vmem:[#allocation7 + $0x4] sm:$0xf]
    %v87 = vld [vmem:[%s6] ss:$0 sm:$0xff]
    %v90 = vunpack.c.l.b16 %v85
    %v91 = vunpack.c.l.b16 %v86
    %v92 = vpack.c.b16 %v91, %v90
    %vm94 = vcmask 130048
    %v96 = vsel %vm94, %v84, 0
    %98 = vmatprep.subr.bf16.mxu0 0
    %99 = vmatpush1.bf16.msra.mxu0 %v92
    %100 = vmatprep.subr.bf16.mxu0 0
    %101 = vmatpush1.bf16.msra.mxu0 0
    %102 = vmatprep.subr.bf16.mxu0 0
    %103 = vmatpush1.bf16.msra.mxu0 0
    %104 = vmatprep.subr.bf16.mxu0 0
    %105 = vmatpush1.bf16.msra.mxu0 0
    %106 = vmatprep.subr.bf16.mxu0 0
    %107 = vmatpush1.bf16.msra.mxu0 0
    %108 = vmatprep.subr.bf16.mxu0 0
    %109 = vmatpush1.bf16.msra.mxu0 0
    %110 = vmatprep.subr.bf16.mxu0 0
    %111 = vmatpush1.bf16.msra.mxu0 0
    %112 = vmatprep.subr.bf16.mxu0 0
    %113 = vmatpush1.bf16.msra.mxu0 0
    %114 = vmatprep.subr.bf16.mxu0 0
    %115 = vmatpush1.bf16.msra.mxu0 0
    %116 = vmatprep.subr.bf16.mxu0 0
    %117 = vmatpush1.bf16.msra.mxu0 0
    %118 = vmatprep.subr.bf16.mxu0 0
    %119 = vmatpush1.bf16.msra.mxu0 0
    %120 = vmatprep.subr.bf16.mxu0 0
    %121 = vmatpush1.bf16.msra.mxu0 0
    %122 = vmatprep.subr.bf16.mxu0 0
    %123 = vmatpush1.bf16.msra.mxu0 0
    %124 = vmatprep.subr.bf16.mxu0 0
    %125 = vmatpush1.bf16.msra.mxu0 0
    %126 = vmatprep.subr.bf16.mxu0 0
    %127 = vmatpush1.bf16.msra.mxu0 0
    %128 = vmatprep.subr.bf16.mxu0 0
    %129 = vmatpush1.bf16.msra.mxu0 0
    %130 = vmatprep.mubr.bf16.mxu0 0
    %131 = vmatmul.mubr.bf16.gmra.mrb[0].mxu0 %v96
    %v132 = vpop.f32.mrb[0].mxu0
    %v133 = vadd.f32 %v87, %v132
    %v134 = vpop.f32.mrb[0].mxu0
    %v135 = vpop.f32.mrb[0].mxu0
    %v136 = vadd.f32 %v87, %v135
    %v137 = vpop.f32.mrb[0].mxu0
    %138 = vdwg.mxu0
    %v139 = vmax.f32 %v133, 0.0
    %v140 = vmax.f32 %v136, 0.0
    %v141 = vld [vmem:[#allocation7 + $0x8] sm:$0xf]
    %v142 = vld [vmem:[#allocation7 + $0xc] sm:$0xf]
    %v143 = vld [vmem:[#allocation7 + $0x10] sm:$0xf]
    %v144 = vld [vmem:[#allocation7 + $0x14] sm:$0xf]
    %v145 = vpack.c.bf16 %v140, %v139
    %v146 = vld [vmem:[%s6 + $0x1] ss:$0 sm:$0xff]
    %v151 = vunpack.c.l.b16 %v141
    %v152 = vunpack.c.l.b16 %v142
    %v153 = vunpack.c.l.b16 %v143
    %v154 = vunpack.c.l.b16 %v144
    %v155 = vpack.c.b16 %v152, %v151
    %v156 = vpack.c.b16 %v154, %v153
    %vm159 = vcmask 261120
    %v161 = vsel %vm159, %v145, 0
    %163 = vmatprep.subr.bf16.mxu0 0
    %164 = vmatpush1.bf16.msra.mxu0 %v155
    %165 = vmatprep.subr.bf16.mxu0 0
    %166 = vmatpush1.bf16.msra.mxu0 %v156
    %167 = vmatprep.subr.bf16.mxu0 0
    %168 = vmatpush1.bf16.msra.mxu0 0
    %169 = vmatprep.subr.bf16.mxu0 0
    %170 = vmatpush1.bf16.msra.mxu0 0
    %171 = vmatprep.subr.bf16.mxu0 0
    %172 = vmatpush1.bf16.msra.mxu0 0
    %173 = vmatprep.subr.bf16.mxu0 0
    %174 = vmatpush1.bf16.msra.mxu0 0
    %175 = vmatprep.subr.bf16.mxu0 0
    %176 = vmatpush1.bf16.msra.mxu0 0
    %177 = vmatprep.subr.bf16.mxu0 0
    %178 = vmatpush1.bf16.msra.mxu0 0
    %179 = vmatprep.subr.bf16.mxu0 0
    %180 = vmatpush1.bf16.msra.mxu0 0
    %181 = vmatprep.subr.bf16.mxu0 0
    %182 = vmatpush1.bf16.msra.mxu0 0
    %183 = vmatprep.subr.bf16.mxu0 0
    %184 = vmatpush1.bf16.msra.mxu0 0
    %185 = vmatprep.subr.bf16.mxu0 0
    %186 = vmatpush1.bf16.msra.mxu0 0
    %187 = vmatprep.subr.bf16.mxu0 0
    %188 = vmatpush1.bf16.msra.mxu0 0
    %189 = vmatprep.subr.bf16.mxu0 0
    %190 = vmatpush1.bf16.msra.mxu0 0
    %191 = vmatprep.subr.bf16.mxu0 0
    %192 = vmatpush1.bf16.msra.mxu0 0
    %193 = vmatprep.subr.bf16.mxu0 0
    %194 = vmatpush1.bf16.msra.mxu0 0
    %195 = vmatprep.mubr.bf16.mxu0 0
    %196 = vmatmul.mubr.bf16.gmra.mrb[0].mxu0 %v161
    %v197 = vpop.f32.mrb[0].mxu0
    %v198 = vadd.f32 %v146, %v197
    %v199 = vpop.f32.mrb[0].mxu0
    %v200 = vpop.f32.mrb[0].mxu0
    %v201 = vadd.f32 %v146, %v200
    %v202 = vpop.f32.mrb[0].mxu0
    %203 = vdwg.mxu0
    %v204 = vmax.f32 %v198, 0.0
    %v205 = vmax.f32 %v201, 0.0
    %v206 = vld [vmem:[#allocation7 + $0x18] sm:$0xf]
    %v207 = vld [vmem:[#allocation7 + $0x1c] sm:$0xf]
    %v208 = vld [vmem:[#allocation7 + $0x20] sm:$0xf]
    %v209 = vld [vmem:[#allocation7 + $0x24] sm:$0xf]
    %v210 = vpack.c.bf16 %v205, %v204
    %v211 = vld [vmem:[%s6 + $0x2] ss:$0 sm:$0xff]
    %v216 = vunpack.c.l.b16 %v206
    %v217 = vunpack.c.l.b16 %v207
    %v218 = vunpack.c.l.b16 %v208
    %v219 = vunpack.c.l.b16 %v209
    %v220 = vpack.c.b16 %v217, %v216
    %v221 = vpack.c.b16 %v219, %v218
    %v225 = vsel %vm159, %v210, 0
    %227 = vmatprep.subr.bf16.mxu0 0
    %228 = vmatpush1.bf16.msra.mxu0 %v220
    %229 = vmatprep.subr.bf16.mxu0 0
    %230 = vmatpush1.bf16.msra.mxu0 %v221
    %231 = vmatprep.subr.bf16.mxu0 0
    %232 = vmatpush1.bf16.msra.mxu0 0
    %233 = vmatprep.subr.bf16.mxu0 0
    %234 = vmatpush1.bf16.msra.mxu0 0
    %235 = vmatprep.subr.bf16.mxu0 0
    %236 = vmatpush1.bf16.msra.mxu0 0
    %237 = vmatprep.subr.bf16.mxu0 0
    %238 = vmatpush1.bf16.msra.mxu0 0
    %239 = vmatprep.subr.bf16.mxu0 0
    %240 = vmatpush1.bf16.msra.mxu0 0
    %241 = vmatprep.subr.bf16.mxu0 0
    %242 = vmatpush1.bf16.msra.mxu0 0
    %243 = vmatprep.subr.bf16.mxu0 0
    %244 = vmatpush1.bf16.msra.mxu0 0
    %245 = vmatprep.subr.bf16.mxu0 0
    %246 = vmatpush1.bf16.msra.mxu0 0
    %247 = vmatprep.subr.bf16.mxu0 0
    %248 = vmatpush1.bf16.msra.mxu0 0
    %249 = vmatprep.subr.bf16.mxu0 0
    %250 = vmatpush1.bf16.msra.mxu0 0
    %251 = vmatprep.subr.bf16.mxu0 0
    %252 = vmatpush1.bf16.msra.mxu0 0
    %253 = vmatprep.subr.bf16.mxu0 0
    %254 = vmatpush1.bf16.msra.mxu0 0
    %255 = vmatprep.subr.bf16.mxu0 0
    %256 = vmatpush1.bf16.msra.mxu0 0
    %257 = vmatprep.subr.bf16.mxu0 0
    %258 = vmatpush1.bf16.msra.mxu0 0
    %259 = vmatprep.mubr.bf16.mxu0 0
    %260 = vmatmul.mubr.bf16.gmra.mrb[0].mxu0 %v225
    %v261 = vpop.f32.mrb[0].mxu0
    %v262 = vadd.f32 %v211, %v261
    %v263 = vpop.f32.mrb[0].mxu0
    %v264 = vpop.f32.mrb[0].mxu0
    %v265 = vadd.f32 %v211, %v264
    %v266 = vpop.f32.mrb[0].mxu0
    %267 = vdwg.mxu0
    %v268 = vpack.c.bf16 %v265, %v262
    %v269 = vld [vmem:[#allocation7 + $0x28] sm:$0x3]
    %v270 = vld [vmem:[%s6 + $0x3] ss:$0 sm:$0xff]
    %vm271 = vcmask 31744
    %v273 = vsel %vm271, %v268, 0
    %vm275 = vcmask 1041408
    %v277 = vsel %vm275, %v269, 0
    %279 = vmatprep.subr.bf16.mxu0 0
    %280 = vmatpush1.bf16.msra.mxu0 %v277
    %281 = vmatprep.subr.bf16.mxu0 0
    %282 = vmatpush1.bf16.msra.mxu0 0
    %283 = vmatprep.subr.bf16.mxu0 0
    %284 = vmatpush1.bf16.msra.mxu0 0
    %285 = vmatprep.subr.bf16.mxu0 0
    %286 = vmatpush1.bf16.msra.mxu0 0
    %287 = vmatprep.subr.bf16.mxu0 0
    %288 = vmatpush1.bf16.msra.mxu0 0
    %289 = vmatprep.subr.bf16.mxu0 0
    %290 = vmatpush1.bf16.msra.mxu0 0
    %291 = vmatprep.subr.bf16.mxu0 0
    %292 = vmatpush1.bf16.msra.mxu0 0
    %293 = vmatprep.subr.bf16.mxu0 0
    %294 = vmatpush1.bf16.msra.mxu0 0
    %295 = vmatprep.subr.bf16.mxu0 0
    %296 = vmatpush1.bf16.msra.mxu0 0
    %297 = vmatprep.subr.bf16.mxu0 0
    %298 = vmatpush1.bf16.msra.mxu0 0
    %299 = vmatprep.subr.bf16.mxu0 0
    %300 = vmatpush1.bf16.msra.mxu0 0
    %301 = vmatprep.subr.bf16.mxu0 0
    %302 = vmatpush1.bf16.msra.mxu0 0
    %303 = vmatprep.subr.bf16.mxu0 0
    %304 = vmatpush1.bf16.msra.mxu0 0
    %305 = vmatprep.subr.bf16.mxu0 0
    %306 = vmatpush1.bf16.msra.mxu0 0
    %307 = vmatprep.subr.bf16.mxu0 0
    %308 = vmatpush1.bf16.msra.mxu0 0
    %309 = vmatprep.subr.bf16.mxu0 0
    %310 = vmatpush1.bf16.msra.mxu0 0
    %311 = vmatprep.mubr.bf16.mxu0 0
    %312 = vmatmul.mubr.bf16.gmra.mrb[0].mxu0 %v273
    %v313 = vpop.f32.mrb[0].mxu0
    %v314 = vadd.f32 %v270, %v313
    %v315 = vpop.f32.mrb[0].mxu0
    %v316 = vpop.f32.mrb[0].mxu0
    %v317 = vadd.f32 %v270, %v316
    %v318 = vpop.f32.mrb[0].mxu0
    %319 = vdwg.mxu0
    %v320 = vmax.f32 %v314, 0.0
    %v321 = vmax.f32 %v317, 0.0
    %v322 = vld [vmem:[#allocation7 + $0x2c] sm:$0xf]
    %v323 = vld [vmem:[#allocation7 + $0x30] sm:$0xf]
    %v324 = vld [vmem:[#allocation7 + $0x34] sm:$0xf]
    %v325 = vld [vmem:[#allocation7 + $0x38] sm:$0xf]
    %v326 = vpack.c.bf16 %v321, %v320
    %v327 = vld [vmem:[%s6 + $0x4] ss:$0 sm:$0xff]
    %v332 = vunpack.c.l.b16 %v322
    %v333 = vunpack.c.l.b16 %v323
    %v334 = vunpack.c.l.b16 %v324
    %v335 = vunpack.c.l.b16 %v325
    %v336 = vpack.c.b16 %v333, %v332
    %v337 = vpack.c.b16 %v335, %v334
    %v341 = vsel %vm159, %v326, 0
    %343 = vmatprep.subr.bf16.mxu0 0
    %344 = vmatpush1.bf16.msra.mxu0 %v336
    %345 = vmatprep.subr.bf16.mxu0 0
    %346 = vmatpush1.bf16.msra.mxu0 %v337
    %347 = vmatprep.subr.bf16.mxu0 0
    %348 = vmatpush1.bf16.msra.mxu0 0
    %349 = vmatprep.subr.bf16.mxu0 0
    %350 = vmatpush1.bf16.msra.mxu0 0
    %351 = vmatprep.subr.bf16.mxu0 0
    %352 = vmatpush1.bf16.msra.mxu0 0
    %353 = vmatprep.subr.bf16.mxu0 0
    %354 = vmatpush1.bf16.msra.mxu0 0
    %355 = vmatprep.subr.bf16.mxu0 0
    %356 = vmatpush1.bf16.msra.mxu0 0
    %357 = vmatprep.subr.bf16.mxu0 0
    %358 = vmatpush1.bf16.msra.mxu0 0
    %359 = vmatprep.subr.bf16.mxu0 0
    %360 = vmatpush1.bf16.msra.mxu0 0
    %361 = vmatprep.subr.bf16.mxu0 0
    %362 = vmatpush1.bf16.msra.mxu0 0
    %363 = vmatprep.subr.bf16.mxu0 0
    %364 = vmatpush1.bf16.msra.mxu0 0
    %365 = vmatprep.subr.bf16.mxu0 0
    %366 = vmatpush1.bf16.msra.mxu0 0
    %367 = vmatprep.subr.bf16.mxu0 0
    %368 = vmatpush1.bf16.msra.mxu0 0
    %369 = vmatprep.subr.bf16.mxu0 0
    %370 = vmatpush1.bf16.msra.mxu0 0
    %371 = vmatprep.subr.bf16.mxu0 0
    %372 = vmatpush1.bf16.msra.mxu0 0
    %373 = vmatprep.subr.bf16.mxu0 0
    %374 = vmatpush1.bf16.msra.mxu0 0
    %375 = vmatprep.mubr.bf16.mxu0 0
    %376 = vmatmul.mubr.bf16.gmra.mrb[0].mxu0 %v341
    %v377 = vpop.f32.mrb[0].mxu0
    %v378 = vadd.f32 %v327, %v377
    %v379 = vpop.f32.mrb[0].mxu0
    %v380 = vpop.f32.mrb[0].mxu0
    %v381 = vadd.f32 %v327, %v380
    %v382 = vpop.f32.mrb[0].mxu0
    %383 = vdwg.mxu0
    %v384 = vmax.f32 %v378, 0.0
    %v385 = vmax.f32 %v381, 0.0
    %v386 = vld [vmem:[#allocation7 + $0x3c] sm:$0xf]
    %v387 = vld [vmem:[#allocation7 + $0x40] sm:$0xf]
    %v388 = vld [vmem:[#allocation7 + $0x44] sm:$0xf]
    %v389 = vld [vmem:[#allocation7 + $0x48] sm:$0xf]
    %v390 = vpack.c.bf16 %v385, %v384
    %v391 = vld [vmem:[%s6 + $0x5] ss:$0 sm:$0xff]
    %v396 = vunpack.c.l.b16 %v386
    %v397 = vunpack.c.l.b16 %v387
    %v398 = vunpack.c.l.b16 %v388
    %v399 = vunpack.c.l.b16 %v389
    %v400 = vpack.c.b16 %v397, %v396
    %v401 = vpack.c.b16 %v399, %v398
    %v405 = vsel %vm159, %v390, 0
    %407 = vmatprep.subr.bf16.mxu0 0
    %408 = vmatpush1.bf16.msra.mxu0 %v400
    %409 = vmatprep.subr.bf16.mxu0 0
    %410 = vmatpush1.bf16.msra.mxu0 %v401
    %411 = vmatprep.subr.bf16.mxu0 0
    %412 = vmatpush1.bf16.msra.mxu0 0
    %413 = vmatprep.subr.bf16.mxu0 0
    %414 = vmatpush1.bf16.msra.mxu0 0
    %415 = vmatprep.subr.bf16.mxu0 0
    %416 = vmatpush1.bf16.msra.mxu0 0
    %417 = vmatprep.subr.bf16.mxu0 0
    %418 = vmatpush1.bf16.msra.mxu0 0
    %419 = vmatprep.subr.bf16.mxu0 0
    %420 = vmatpush1.bf16.msra.mxu0 0
    %421 = vmatprep.subr.bf16.mxu0 0
    %422 = vmatpush1.bf16.msra.mxu0 0
    %423 = vmatprep.subr.bf16.mxu0 0
    %424 = vmatpush1.bf16.msra.mxu0 0
    %425 = vmatprep.subr.bf16.mxu0 0
    %426 = vmatpush1.bf16.msra.mxu0 0
    %427 = vmatprep.subr.bf16.mxu0 0
    %428 = vmatpush1.bf16.msra.mxu0 0
    %429 = vmatprep.subr.bf16.mxu0 0
    %430 = vmatpush1.bf16.msra.mxu0 0
    %431 = vmatprep.subr.bf16.mxu0 0
    %432 = vmatpush1.bf16.msra.mxu0 0
    %433 = vmatprep.subr.bf16.mxu0 0
    %434 = vmatpush1.bf16.msra.mxu0 0
    %435 = vmatprep.subr.bf16.mxu0 0
    %436 = vmatpush1.bf16.msra.mxu0 0
    %437 = vmatprep.subr.bf16.mxu0 0
    %438 = vmatpush1.bf16.msra.mxu0 0
    %439 = vmatprep.mubr.bf16.mxu0 0
    %440 = vmatmul.mubr.bf16.gmra.mrb[0].mxu0 %v405
    %v441 = vpop.f32.mrb[0].mxu0
    %v442 = vadd.f32 %v391, %v441
    %v443 = vpop.f32.mrb[0].mxu0
    %v444 = vpop.f32.mrb[0].mxu0
    %v445 = vadd.f32 %v391, %v444
    %v446 = vpop.f32.mrb[0].mxu0
    %447 = vdwg.mxu0
    %v448 = vrot.slane %v262, 2
    %v449 = vrot.slane %v265, 2
    %v450 = vlaneseq
    %v451 = vshrl.u32 %v450, 7
    %vm452 = vcmp.lt.s32.totalorder %v451, 6
    %v453 = vsel %vm452, %v448, %v449
    %v454 = vsel %vm452, %v449, %v448
    %v455 = vpack.c.bf16 %v454, %v453
    %v456 = vrot.slane %v262, 1
    %v457 = vrot.slane %v265, 1
    %vm458 = vcmp.lt.s32.totalorder %v451, 7
    %v459 = vsel %vm458, %v456, %v457
    %v460 = vsel %vm458, %v457, %v456
    %v461 = vpack.c.bf16 %v460, %v459
    %v462 = vrot.slane %v82, 1
    %v463 = vrot.slane %v83, 1
    %v464 = vsel %vm458, %v462, %v463
    %v465 = vsel %vm458, %v463, %v462
    %v466 = vpack.c.bf16 %v465, %v464
    %v467 = vld [vmem:[#allocation6] sm:$0x33]
    %v468 = vld [vmem:[#allocation6 + $0x8] sm:$0x33]
    %v470 = vunpack.c.l.b16 %v468
    %v471 = vunpack.c.h.b16 %v468
    %v472 = vpack.c.b16 %v470, %v470
    %v473 = vpack.c.b16 %v471, %v471
    %v475 = vsel %vm271, %v455, 0
    %v478 = vsel %vm275, %v472, 0
    %v481 = vsel %vm275, %v473, 0
    %483 = vmatprep.subr.bf16.mxu0 %v481
    %484 = vmatpush1.bf16.msra.mxu0 %v478
    %485 = vmatprep.subr.bf16.mxu0 0
    %486 = vmatpush1.bf16.msra.mxu0 0
    %487 = vmatprep.subr.bf16.mxu0 0
    %488 = vmatpush1.bf16.msra.mxu0 0
    %489 = vmatprep.subr.bf16.mxu0 0
    %490 = vmatpush1.bf16.msra.mxu0 0
    %491 = vmatprep.subr.bf16.mxu0 0
    %492 = vmatpush1.bf16.msra.mxu0 0
    %493 = vmatprep.subr.bf16.mxu0 0
    %494 = vmatpush1.bf16.msra.mxu0 0
    %495 = vmatprep.subr.bf16.mxu0 0
    %496 = vmatpush1.bf16.msra.mxu0 0
    %497 = vmatprep.subr.bf16.mxu0 0
    %498 = vmatpush1.bf16.msra.mxu0 0
    %499 = vmatprep.subr.bf16.mxu0 0
    %500 = vmatpush1.bf16.msra.mxu0 0
    %501 = vmatprep.subr.bf16.mxu0 0
    %502 = vmatpush1.bf16.msra.mxu0 0
    %503 = vmatprep.subr.bf16.mxu0 0
    %504 = vmatpush1.bf16.msra.mxu0 0
    %505 = vmatprep.subr.bf16.mxu0 0
    %506 = vmatpush1.bf16.msra.mxu0 0
    %507 = vmatprep.subr.bf16.mxu0 0
    %508 = vmatpush1.bf16.msra.mxu0 0
    %509 = vmatprep.subr.bf16.mxu0 0
    %510 = vmatpush1.bf16.msra.mxu0 0
    %511 = vmatprep.subr.bf16.mxu0 0
    %512 = vmatpush1.bf16.msra.mxu0 0
    %513 = vmatprep.subr.bf16.mxu0 0
    %514 = vmatpush1.bf16.msra.mxu0 0
    %515 = vmatprep.mubr.bf16.mxu0 0
    %516 = vmatmul.mubr.bf16.gmra.mrb[0].mxu0 %v475
    %v517 = vpop.f32.mrb[0].mxu0
    %v518 = vadd.f32 0.0, %v517
    %v519 = vpop.f32.mrb[0].mxu0
    %v520 = vadd.f32 0.0, %v519
    %v521 = vpop.f32.mrb[0].mxu0
    %v522 = vadd.f32 0.0, %v521
    %v523 = vpop.f32.mrb[0].mxu0
    %v524 = vadd.f32 0.0, %v523
    %525 = vdwg.mxu0
    %v527 = vunpack.c.l.b16 %v467
    %v528 = vunpack.c.h.b16 %v467
    %v529 = vpack.c.b16 %v527, %v527
    %v530 = vpack.c.b16 %v528, %v528
    %v532 = vsel %vm275, %v529, 0
    %v535 = vsel %vm275, %v530, 0
    %537 = vmatprep.subr.bf16.mxu0 %v535
    %538 = vmatpush1.bf16.msra.mxu0 %v532
    %539 = vmatprep.subr.bf16.mxu0 0
    %540 = vmatpush1.bf16.msra.mxu0 0
    %541 = vmatprep.subr.bf16.mxu0 0
    %542 = vmatpush1.bf16.msra.mxu0 0
    %543 = vmatprep.subr.bf16.mxu0 0
    %544 = vmatpush1.bf16.msra.mxu0 0
    %545 = vmatprep.subr.bf16.mxu0 0
    %546 = vmatpush1.bf16.msra.mxu0 0
    %547 = vmatprep.subr.bf16.mxu0 0
    %548 = vmatpush1.bf16.msra.mxu0 0
    %549 = vmatprep.subr.bf16.mxu0 0
    %550 = vmatpush1.bf16.msra.mxu0 0
    %551 = vmatprep.subr.bf16.mxu0 0
    %552 = vmatpush1.bf16.msra.mxu0 0
    %553 = vmatprep.subr.bf16.mxu0 0
    %554 = vmatpush1.bf16.msra.mxu0 0
    %555 = vmatprep.subr.bf16.mxu0 0
    %556 = vmatpush1.bf16.msra.mxu0 0
    %557 = vmatprep.subr.bf16.mxu0 0
    %558 = vmatpush1.bf16.msra.mxu0 0
    %559 = vmatprep.subr.bf16.mxu0 0
    %560 = vmatpush1.bf16.msra.mxu0 0
    %561 = vmatprep.subr.bf16.mxu0 0
    %562 = vmatpush1.bf16.msra.mxu0 0
    %563 = vmatprep.subr.bf16.mxu0 0
    %564 = vmatpush1.bf16.msra.mxu0 0
    %565 = vmatprep.subr.bf16.mxu0 0
    %566 = vmatpush1.bf16.msra.mxu0 0
    %567 = vmatprep.subr.bf16.mxu0 0
    %568 = vmatpush1.bf16.msra.mxu0 0
    %569 = vmatprep.mubr.bf16.mxu0 0
    %570 = vmatmul.mubr.bf16.gmra.mrb[0].mxu0 %v273
    %v571 = vpop.f32.mrb[0].mxu0
    %v572 = vadd.f32 %v518, %v571
    %v573 = vpop.f32.mrb[0].mxu0
    %v574 = vadd.f32 %v520, %v573
    %v575 = vpop.f32.mrb[0].mxu0
    %v576 = vadd.f32 %v522, %v575
    %v577 = vpop.f32.mrb[0].mxu0
    %v578 = vadd.f32 %v524, %v577
    %579 = vdwg.mxu0
    %s580 = scalar_lea.vmem %s6, 6
    %v581 = vld [vmem:[%s580] ss:$8 sm:$0x3]
    %v583 = vlaneseq
    %v584 = vshrl.u32 %v583, 7
    %v585 = vsub.s32 0, %v584
    %v586 = vrot.slane %v581, %v585
    %v587 = vlaneseq
    %v588 = vshrl.u32 %v587, 7
    %v589 = vsub.s32 1, %v588
    %v590 = vrot.slane %v581, %v589
    %v593 = vadd.f32 %v572, %v586
    %v594 = vadd.f32 %v574, %v590
    %v595 = vadd.f32 %v576, %v586
    %v596 = vadd.f32 %v578, %v590
    %v597 = vmax.f32 %v593, 0.0
    %v598 = vmax.f32 %v594, 0.0
    %v599 = vmax.f32 %v595, 0.0
    %v600 = vmax.f32 %v596, 0.0
    %v601 = vld [vmem:[#allocation4] sm:$0xff]
    %v602 = vld [vmem:[#allocation4 + $0x8] sm:$0xff]
    %v603 = vld [vmem:[#allocation4 + $0x10] sm:$0xff]
    %v604 = vld [vmem:[#allocation4 + $0x18] sm:$0xff]
    %v605 = vld [vmem:[#allocation4 + $0x20] sm:$0xff]
    %v606 = vld [vmem:[#allocation4 + $0x28] sm:$0xff]
    %v607 = vld [vmem:[#allocation4 + $0x30] sm:$0xff]
    %v608 = vld [vmem:[#allocation4 + $0x38] sm:$0xff]
    %v609 = vld [vmem:[#allocation4 + $0x40] sm:$0xff]
    %v610 = vld [vmem:[#allocation4 + $0x48] sm:$0xff]
    %v611 = vld [vmem:[#allocation4 + $0x50] sm:$0xff]
    %v612 = vld [vmem:[#allocation4 + $0x58] sm:$0xff]
    %v613 = vld [vmem:[#allocation4 + $0x60] sm:$0xff]
    %v614 = vld [vmem:[#allocation4 + $0x68] sm:$0xff]
    %v615 = vld [vmem:[#allocation4 + $0x70] sm:$0xff]
    %v616 = vld [vmem:[#allocation4 + $0x78] sm:$0xff]
    %v617 = vld [vmem:[#allocation4 + $0x80] sm:$0xff]
    %v618 = vld [vmem:[#allocation4 + $0x88] sm:$0xff]
    %v619 = vld [vmem:[#allocation4 + $0x90] sm:$0xff]
    %v620 = vld [vmem:[#allocation4 + $0x98] sm:$0xff]
    %v621 = vld [vmem:[#allocation4 + $0xa0] sm:$0xff]
    %v622 = vld [vmem:[#allocation4 + $0xa8] sm:$0xff]
    %v623 = vld [vmem:[#allocation4 + $0xb0] sm:$0xff]
    %v624 = vld [vmem:[#allocation4 + $0xb8] sm:$0xff]
    %v625 = vld [vmem:[#allocation4 + $0xc0] sm:$0xff]
    %v626 = vld [vmem:[#allocation4 + $0xc8] sm:$0xff]
    %v627 = vld [vmem:[#allocation4 + $0xd0] sm:$0xff]
    %v628 = vld [vmem:[#allocation4 + $0xd8] sm:$0xff]
    %v629 = vld [vmem:[#allocation4 + $0xe0] sm:$0xff]
    %v630 = vld [vmem:[#allocation4 + $0xe8] sm:$0xff]
    %v631 = vld [vmem:[#allocation4 + $0xf0] sm:$0xff]
    %v632 = vld [vmem:[#allocation4 + $0xf8] sm:$0xff]
    %v633 = vpack.c.bf16 %v599, %v597
    %v634 = vpack.c.bf16 %v600, %v598
    %s635 = scalar_lea.vmem %s6, 7
    %v636 = vld [vmem:[%s635] ss:$8 sm:$0x3]
    %v638 = vlaneseq
    %v639 = vshrl.u32 %v638, 7
    %v640 = vsub.s32 0, %v639
    %v641 = vrot.slane %v636, %v640
    %v642 = vlaneseq
    %v643 = vshrl.u32 %v642, 7
    %v644 = vsub.s32 1, %v643
    %v645 = vrot.slane %v636, %v644
    %v680 = vunpack.c.l.b16 %v601
    %v681 = vunpack.c.h.b16 %v601
    %v682 = vunpack.c.l.b16 %v602
    %v683 = vunpack.c.h.b16 %v602
    %v684 = vunpack.c.l.b16 %v603
    %v685 = vunpack.c.h.b16 %v603
    %v686 = vunpack.c.l.b16 %v604
    %v687 = vunpack.c.h.b16 %v604
    %v688 = vunpack.c.l.b16 %v605
    %v689 = vunpack.c.h.b16 %v605
    %v690 = vunpack.c.l.b16 %v606
    %v691 = vunpack.c.h.b16 %v606
    %v692 = vunpack.c.l.b16 %v607
    %v693 = vunpack.c.h.b16 %v607
    %v694 = vunpack.c.l.b16 %v608
    %v695 = vunpack.c.h.b16 %v608
    %v696 = vunpack.c.l.b16 %v609
    %v697 = vunpack.c.h.b16 %v609
    %v698 = vunpack.c.l.b16 %v610
    %v699 = vunpack.c.h.b16 %v610
    %v700 = vunpack.c.l.b16 %v611
    %v701 = vunpack.c.h.b16 %v611
    %v702 = vunpack.c.l.b16 %v612
    %v703 = vunpack.c.h.b16 %v612
    %v704 = vunpack.c.l.b16 %v613
    %v705 = vunpack.c.h.b16 %v613
    %v706 = vunpack.c.l.b16 %v614
    %v707 = vunpack.c.h.b16 %v614
    %v708 = vunpack.c.l.b16 %v615
    %v709 = vunpack.c.h.b16 %v615
    %v710 = vunpack.c.l.b16 %v616
    %v711 = vunpack.c.h.b16 %v616
    %v712 = vunpack.c.l.b16 %v617
    %v713 = vunpack.c.h.b16 %v617
    %v714 = vunpack.c.l.b16 %v618
    %v715 = vunpack.c.h.b16 %v618
    %v716 = vunpack.c.l.b16 %v619
    %v717 = vunpack.c.h.b16 %v619
    %v718 = vunpack.c.l.b16 %v620
    %v719 = vunpack.c.h.b16 %v620
    %v720 = vunpack.c.l.b16 %v621
    %v721 = vunpack.c.h.b16 %v621
    %v722 = vunpack.c.l.b16 %v622
    %v723 = vunpack.c.h.b16 %v622
    %v724 = vunpack.c.l.b16 %v623
    %v725 = vunpack.c.h.b16 %v623
    %v726 = vunpack.c.l.b16 %v624
    %v727 = vunpack.c.h.b16 %v624
    %v728 = vunpack.c.l.b16 %v625
    %v729 = vunpack.c.h.b16 %v625
    %v730 = vunpack.c.l.b16 %v626
    %v731 = vunpack.c.h.b16 %v626
    %v732 = vunpack.c.l.b16 %v627
    %v733 = vunpack.c.h.b16 %v627
    %v734 = vunpack.c.l.b16 %v628
    %v735 = vunpack.c.h.b16 %v628
    %v736 = vunpack.c.l.b16 %v629
    %v737 = vunpack.c.h.b16 %v629
    %v738 = vunpack.c.l.b16 %v630
    %v739 = vunpack.c.h.b16 %v630
    %v740 = vunpack.c.l.b16 %v631
    %v741 = vunpack.c.h.b16 %v631
    %v742 = vunpack.c.l.b16 %v632
    %v743 = vunpack.c.h.b16 %v632
    %v744 = vpack.c.b16 %v682, %v680
    %v745 = vpack.c.b16 %v683, %v681
    %v746 = vpack.c.b16 %v686, %v684
    %v747 = vpack.c.b16 %v687, %v685
    %v748 = vpack.c.b16 %v690, %v688
    %v749 = vpack.c.b16 %v691, %v689
    %v750 = vpack.c.b16 %v694, %v692
    %v751 = vpack.c.b16 %v695, %v693
    %v752 = vpack.c.b16 %v698, %v696
    %v753 = vpack.c.b16 %v699, %v697
    %v754 = vpack.c.b16 %v702, %v700
    %v755 = vpack.c.b16 %v703, %v701
    %v756 = vpack.c.b16 %v706, %v704
    %v757 = vpack.c.b16 %v707, %v705
    %v758 = vpack.c.b16 %v710, %v708
    %v759 = vpack.c.b16 %v711, %v709
    %v760 = vpack.c.b16 %v714, %v712
    %v761 = vpack.c.b16 %v715, %v713
    %v762 = vpack.c.b16 %v718, %v716
    %v763 = vpack.c.b16 %v719, %v717
    %v764 = vpack.c.b16 %v722, %v720
    %v765 = vpack.c.b16 %v723, %v721
    %v766 = vpack.c.b16 %v726, %v724
    %v767 = vpack.c.b16 %v727, %v725
    %v768 = vpack.c.b16 %v730, %v728
    %v769 = vpack.c.b16 %v731, %v729
    %v770 = vpack.c.b16 %v734, %v732
    %v771 = vpack.c.b16 %v735, %v733
    %v772 = vpack.c.b16 %v738, %v736
    %v773 = vpack.c.b16 %v739, %v737
    %v774 = vpack.c.b16 %v742, %v740
    %v775 = vpack.c.b16 %v743, %v741
    %808 = vmatprep.subr.bf16.mxu0 %v745
    %809 = vmatpush1.bf16.msra.mxu0 %v744
    %810 = vmatprep.subr.bf16.mxu0 %v747
    %811 = vmatpush1.bf16.msra.mxu0 %v746
    %812 = vmatprep.subr.bf16.mxu0 %v749
    %813 = vmatpush1.bf16.msra.mxu0 %v748
    %814 = vmatprep.subr.bf16.mxu0 %v751
    %815 = vmatpush1.bf16.msra.mxu0 %v750
    %816 = vmatprep.subr.bf16.mxu0 %v753
    %817 = vmatpush1.bf16.msra.mxu0 %v752
    %818 = vmatprep.subr.bf16.mxu0 %v755
    %819 = vmatpush1.bf16.msra.mxu0 %v754
    %820 = vmatprep.subr.bf16.mxu0 %v757
    %821 = vmatpush1.bf16.msra.mxu0 %v756
    %822 = vmatprep.subr.bf16.mxu0 %v759
    %823 = vmatpush1.bf16.msra.mxu0 %v758
    %824 = vmatprep.subr.bf16.mxu0 %v761
    %825 = vmatpush1.bf16.msra.mxu0 %v760
    %826 = vmatprep.subr.bf16.mxu0 %v763
    %827 = vmatpush1.bf16.msra.mxu0 %v762
    %828 = vmatprep.subr.bf16.mxu0 %v765
    %829 = vmatpush1.bf16.msra.mxu0 %v764
    %830 = vmatprep.subr.bf16.mxu0 %v767
    %831 = vmatpush1.bf16.msra.mxu0 %v766
    %832 = vmatprep.subr.bf16.mxu0 %v769
    %833 = vmatpush1.bf16.msra.mxu0 %v768
    %834 = vmatprep.subr.bf16.mxu0 %v771
    %835 = vmatpush1.bf16.msra.mxu0 %v770
    %836 = vmatprep.subr.bf16.mxu0 %v773
    %837 = vmatpush1.bf16.msra.mxu0 %v772
    %838 = vmatprep.subr.bf16.mxu0 %v775
    %839 = vmatpush1.bf16.msra.mxu0 %v774
    %840 = vmatprep.mubr.bf16.mxu0 %v634
    %841 = vmatmul.mubr.bf16.gmra.mrb[0].mxu0 %v633
    %v842 = vpop.f32.mrb[0].mxu0
    %v843 = vadd.f32 %v641, %v842
    %v844 = vpop.f32.mrb[0].mxu0
    %v845 = vadd.f32 %v645, %v844
    %v846 = vpop.f32.mrb[0].mxu0
    %v847 = vadd.f32 %v641, %v846
    %v848 = vpop.f32.mrb[0].mxu0
    %v849 = vadd.f32 %v645, %v848
    %850 = vdwg.mxu0
    %v851 = vmax.f32 %v843, 0.0
    %v852 = vmax.f32 %v845, 0.0
    %v853 = vmax.f32 %v847, 0.0
    %v854 = vmax.f32 %v849, 0.0
    %s855 = scalar_lea.vmem [#allocation4], 256
    %v856 = vld [vmem:[%s855] sm:$0xff]
    %v857 = vld [vmem:[%s855 + $0x8] sm:$0xff]
    %v858 = vld [vmem:[%s855 + $0x10] sm:$0xff]
    %v859 = vld [vmem:[%s855 + $0x18] sm:$0xff]
    %v860 = vld [vmem:[%s855 + $0x20] sm:$0xff]
    %v861 = vld [vmem:[%s855 + $0x28] sm:$0xff]
    %v862 = vld [vmem:[%s855 + $0x30] sm:$0xff]
    %v863 = vld [vmem:[%s855 + $0x38] sm:$0xff]
    %v864 = vld [vmem:[%s855 + $0x40] sm:$0xff]
    %v865 = vld [vmem:[%s855 + $0x48] sm:$0xff]
    %v866 = vld [vmem:[%s855 + $0x50] sm:$0xff]
    %v867 = vld [vmem:[%s855 + $0x58] sm:$0xff]
    %v868 = vld [vmem:[%s855 + $0x60] sm:$0xff]
    %v869 = vld [vmem:[%s855 + $0x68] sm:$0xff]
    %v870 = vld [vmem:[%s855 + $0x70] sm:$0xff]
    %v871 = vld [vmem:[%s855 + $0x78] sm:$0xff]
    %v872 = vld [vmem:[%s855 + $0x80] sm:$0xff]
    %v873 = vld [vmem:[%s855 + $0x88] sm:$0xff]
    %v874 = vld [vmem:[%s855 + $0x90] sm:$0xff]
    %v875 = vld [vmem:[%s855 + $0x98] sm:$0xff]
    %v876 = vld [vmem:[%s855 + $0xa0] sm:$0xff]
    %v877 = vld [vmem:[%s855 + $0xa8] sm:$0xff]
    %v878 = vld [vmem:[%s855 + $0xb0] sm:$0xff]
    %v879 = vld [vmem:[%s855 + $0xb8] sm:$0xff]
    %v880 = vld [vmem:[%s855 + $0xc0] sm:$0xff]
    %v881 = vld [vmem:[%s855 + $0xc8] sm:$0xff]
    %v882 = vld [vmem:[%s855 + $0xd0] sm:$0xff]
    %v883 = vld [vmem:[%s855 + $0xd8] sm:$0xff]
    %v884 = vld [vmem:[%s855 + $0xe0] sm:$0xff]
    %v885 = vld [vmem:[%s855 + $0xe8] sm:$0xff]
    %v886 = vld [vmem:[%s855 + $0xf0] sm:$0xff]
    %v887 = vld [vmem:[%s855 + $0xf8] sm:$0xff]
    %v888 = vpack.c.bf16 %v853, %v851
    %v889 = vpack.c.bf16 %v854, %v852
    %s890 = scalar_lea.vmem %s6, 16
    %v891 = vld [vmem:[%s890] ss:$8 sm:$0x3]
    %v893 = vlaneseq
    %v894 = vshrl.u32 %v893, 7
    %v895 = vsub.s32 0, %v894
    %v896 = vrot.slane %v891, %v895
    %v897 = vlaneseq
    %v898 = vshrl.u32 %v897, 7
    %v899 = vsub.s32 1, %v898
    %v900 = vrot.slane %v891, %v899
    %v935 = vunpack.c.l.b16 %v856
    %v936 = vunpack.c.h.b16 %v856
    %v937 = vunpack.c.l.b16 %v857
    %v938 = vunpack.c.h.b16 %v857
    %v939 = vunpack.c.l.b16 %v858
    %v940 = vunpack.c.h.b16 %v858
    %v941 = vunpack.c.l.b16 %v859
    %v942 = vunpack.c.h.b16 %v859
    %v943 = vunpack.c.l.b16 %v860
    %v944 = vunpack.c.h.b16 %v860
    %v945 = vunpack.c.l.b16 %v861
    %v946 = vunpack.c.h.b16 %v861
    %v947 = vunpack.c.l.b16 %v862
    %v948 = vunpack.c.h.b16 %v862
    %v949 = vunpack.c.l.b16 %v863
    %v950 = vunpack.c.h.b16 %v863
    %v951 = vunpack.c.l.b16 %v864
    %v952 = vunpack.c.h.b16 %v864
    %v953 = vunpack.c.l.b16 %v865
    %v954 = vunpack.c.h.b16 %v865
    %v955 = vunpack.c.l.b16 %v866
    %v956 = vunpack.c.h.b16 %v866
    %v957 = vunpack.c.l.b16 %v867
    %v958 = vunpack.c.h.b16 %v867
    %v959 = vunpack.c.l.b16 %v868
    %v960 = vunpack.c.h.b16 %v868
    %v961 = vunpack.c.l.b16 %v869
    %v962 = vunpack.c.h.b16 %v869
    %v963 = vunpack.c.l.b16 %v870
    %v964 = vunpack.c.h.b16 %v870
    %v965 = vunpack.c.l.b16 %v871
    %v966 = vunpack.c.h.b16 %v871
    %v967 = vunpack.c.l.b16 %v872
    %v968 = vunpack.c.h.b16 %v872
    %v969 = vunpack.c.l.b16 %v873
    %v970 = vunpack.c.h.b16 %v873
    %v971 = vunpack.c.l.b16 %v874
    %v972 = vunpack.c.h.b16 %v874
    %v973 = vunpack.c.l.b16 %v875
    %v974 = vunpack.c.h.b16 %v875
    %v975 = vunpack.c.l.b16 %v876
    %v976 = vunpack.c.h.b16 %v876
    %v977 = vunpack.c.l.b16 %v877
    %v978 = vunpack.c.h.b16 %v877
    %v979 = vunpack.c.l.b16 %v878
    %v980 = vunpack.c.h.b16 %v878
    %v981 = vunpack.c.l.b16 %v879
    %v982 = vunpack.c.h.b16 %v879
    %v983 = vunpack.c.l.b16 %v880
    %v984 = vunpack.c.h.b16 %v880
    %v985 = vunpack.c.l.b16 %v881
    %v986 = vunpack.c.h.b16 %v881
    %v987 = vunpack.c.l.b16 %v882
    %v988 = vunpack.c.h.b16 %v882
    %v989 = vunpack.c.l.b16 %v883
    %v990 = vunpack.c.h.b16 %v883
    %v991 = vunpack.c.l.b16 %v884
    %v992 = vunpack.c.h.b16 %v884
    %v993 = vunpack.c.l.b16 %v885
    %v994 = vunpack.c.h.b16 %v885
    %v995 = vunpack.c.l.b16 %v886
    %v996 = vunpack.c.h.b16 %v886
    %v997 = vunpack.c.l.b16 %v887
    %v998 = vunpack.c.h.b16 %v887
    %v999 = vpack.c.b16 %v937, %v935
    %v1000 = vpack.c.b16 %v938, %v936
    %v1001 = vpack.c.b16 %v941, %v939
    %v1002 = vpack.c.b16 %v942, %v940
    %v1003 = vpack.c.b16 %v945, %v943
    %v1004 = vpack.c.b16 %v946, %v944
    %v1005 = vpack.c.b16 %v949, %v947
    %v1006 = vpack.c.b16 %v950, %v948
    %v1007 = vpack.c.b16 %v953, %v951
    %v1008 = vpack.c.b16 %v954, %v952
    %v1009 = vpack.c.b16 %v957, %v955
    %v1010 = vpack.c.b16 %v958, %v956
    %v1011 = vpack.c.b16 %v961, %v959
    %v1012 = vpack.c.b16 %v962, %v960
    %v1013 = vpack.c.b16 %v965, %v963
    %v1014 = vpack.c.b16 %v966, %v964
    %v1015 = vpack.c.b16 %v969, %v967
    %v1016 = vpack.c.b16 %v970, %v968
    %v1017 = vpack.c.b16 %v973, %v971
    %v1018 = vpack.c.b16 %v974, %v972
    %v1019 = vpack.c.b16 %v977, %v975
    %v1020 = vpack.c.b16 %v978, %v976
    %v1021 = vpack.c.b16 %v981, %v979
    %v1022 = vpack.c.b16 %v982, %v980
    %v1023 = vpack.c.b16 %v985, %v983
    %v1024 = vpack.c.b16 %v986, %v984
    %v1025 = vpack.c.b16 %v989, %v987
    %v1026 = vpack.c.b16 %v990, %v988
    %v1027 = vpack.c.b16 %v993, %v991
    %v1028 = vpack.c.b16 %v994, %v992
    %v1029 = vpack.c.b16 %v997, %v995
    %v1030 = vpack.c.b16 %v998, %v996
    %1063 = vmatprep.subr.bf16.mxu0 %v1000
    %1064 = vmatpush1.bf16.msra.mxu0 %v999
    %1065 = vmatprep.subr.bf16.mxu0 %v1002
    %1066 = vmatpush1.bf16.msra.mxu0 %v1001
    %1067 = vmatprep.subr.bf16.mxu0 %v1004
    %1068 = vmatpush1.bf16.msra.mxu0 %v1003
    %1069 = vmatprep.subr.bf16.mxu0 %v1006
    %1070 = vmatpush1.bf16.msra.mxu0 %v1005
    %1071 = vmatprep.subr.bf16.mxu0 %v1008
    %1072 = vmatpush1.bf16.msra.mxu0 %v1007
    %1073 = vmatprep.subr.bf16.mxu0 %v1010
    %1074 = vmatpush1.bf16.msra.mxu0 %v1009
    %1075 = vmatprep.subr.bf16.mxu0 %v1012
    %1076 = vmatpush1.bf16.msra.mxu0 %v1011
    %1077 = vmatprep.subr.bf16.mxu0 %v1014
    %1078 = vmatpush1.bf16.msra.mxu0 %v1013
    %1079 = vmatprep.subr.bf16.mxu0 %v1016
    %1080 = vmatpush1.bf16.msra.mxu0 %v1015
    %1081 = vmatprep.subr.bf16.mxu0 %v1018
    %1082 = vmatpush1.bf16.msra.mxu0 %v1017
    %1083 = vmatprep.subr.bf16.mxu0 %v1020
    %1084 = vmatpush1.bf16.msra.mxu0 %v1019
    %1085 = vmatprep.subr.bf16.mxu0 %v1022
    %1086 = vmatpush1.bf16.msra.mxu0 %v1021
    %1087 = vmatprep.subr.bf16.mxu0 %v1024
    %1088 = vmatpush1.bf16.msra.mxu0 %v1023
    %1089 = vmatprep.subr.bf16.mxu0 %v1026
    %1090 = vmatpush1.bf16.msra.mxu0 %v1025
    %1091 = vmatprep.subr.bf16.mxu0 %v1028
    %1092 = vmatpush1.bf16.msra.mxu0 %v1027
    %1093 = vmatprep.subr.bf16.mxu0 %v1030
    %1094 = vmatpush1.bf16.msra.mxu0 %v1029
    %1095 = vmatprep.mubr.bf16.mxu0 %v889
    %1096 = vmatmul.mubr.bf16.gmra.mrb[0].mxu0 %v888
    %v1097 = vpop.f32.mrb[0].mxu0
    %v1098 = vadd.f32 %v896, %v1097
    %v1099 = vpop.f32.mrb[0].mxu0
    %v1100 = vadd.f32 %v900, %v1099
    %v1101 = vpop.f32.mrb[0].mxu0
    %v1102 = vadd.f32 %v896, %v1101
    %v1103 = vpop.f32.mrb[0].mxu0
    %v1104 = vadd.f32 %v900, %v1103
    %1105 = vdwg.mxu0
    %v1106 = vmax.f32 %v1098, 0.0
    %v1107 = vmax.f32 %v1100, 0.0
    %v1108 = vmax.f32 %v1102, 0.0
    %v1109 = vmax.f32 %v1104, 0.0
    %v1110 = vld [vmem:[#allocation7 + $0x4c] sm:$0xf]
    %v1111 = vld [vmem:[#allocation7 + $0x50] sm:$0xf]
    %v1112 = vld [vmem:[#allocation7 + $0x54] sm:$0xf]
    %v1113 = vld [vmem:[#allocation7 + $0x58] sm:$0xf]
    %v1114 = vld [vmem:[#allocation7 + $0x5c] sm:$0xf]
    %v1115 = vld [vmem:[#allocation7 + $0x60] sm:$0xf]
    %v1116 = vld [vmem:[#allocation7 + $0x64] sm:$0xf]
    %v1117 = vld [vmem:[#allocation7 + $0x68] sm:$0xf]
    %v1118 = vld [vmem:[#allocation7 + $0x6c] sm:$0xf]
    %v1119 = vld [vmem:[#allocation7 + $0x70] sm:$0xf]
    %v1120 = vld [vmem:[#allocation7 + $0x74] sm:$0xf]
    %v1121 = vld [vmem:[#allocation7 + $0x78] sm:$0xf]
    %v1122 = vld [vmem:[#allocation7 + $0x7c] sm:$0xf]
    %v1123 = vld [vmem:[#allocation7 + $0x80] sm:$0xf]
    %v1124 = vld [vmem:[#allocation7 + $0x84] sm:$0xf]
    %v1125 = vld [vmem:[#allocation7 + $0x88] sm:$0xf]
    %v1126 = vld [vmem:[#allocation7 + $0x8c] sm:$0xf]
    %v1127 = vld [vmem:[#allocation7 + $0x90] sm:$0xf]
    %v1128 = vld [vmem:[#allocation7 + $0x94] sm:$0xf]
    %v1129 = vld [vmem:[#allocation7 + $0x98] sm:$0xf]
    %v1130 = vld [vmem:[#allocation7 + $0x9c] sm:$0xf]
    %v1131 = vld [vmem:[#allocation7 + $0xa0] sm:$0xf]
    %v1132 = vld [vmem:[#allocation7 + $0xa4] sm:$0xf]
    %v1133 = vld [vmem:[#allocation7 + $0xa8] sm:$0xf]
    %v1134 = vld [vmem:[#allocation7 + $0xac] sm:$0xf]
    %v1135 = vld [vmem:[#allocation7 + $0xb0] sm:$0xf]
    %v1136 = vld [vmem:[#allocation7 + $0xb4] sm:$0xf]
    %v1137 = vld [vmem:[#allocation7 + $0xb8] sm:$0xf]
    %v1138 = vld [vmem:[#allocation7 + $0xbc] sm:$0xf]
    %v1139 = vld [vmem:[#allocation7 + $0xc0] sm:$0xf]
    %v1140 = vld [vmem:[#allocation7 + $0xc4] sm:$0xf]
    %v1141 = vld [vmem:[#allocation7 + $0xc8] sm:$0xf]
    %v1142 = vpack.c.bf16 %v1108, %v1106
    %v1143 = vpack.c.bf16 %v1109, %v1107
    %v1144 = vld [vmem:[%s6 + $0x11] ss:$0 sm:$0xff]
    %v1177 = vunpack.c.l.b16 %v1110
    %v1178 = vunpack.c.l.b16 %v1111
    %v1179 = vunpack.c.l.b16 %v1112
    %v1180 = vunpack.c.l.b16 %v1113
    %v1181 = vunpack.c.l.b16 %v1114
    %v1182 = vunpack.c.l.b16 %v1115
    %v1183 = vunpack.c.l.b16 %v1116
    %v1184 = vunpack.c.l.b16 %v1117
    %v1185 = vunpack.c.l.b16 %v1118
    %v1186 = vunpack.c.l.b16 %v1119
    %v1187 = vunpack.c.l.b16 %v1120
    %v1188 = vunpack.c.l.b16 %v1121
    %v1189 = vunpack.c.l.b16 %v1122
    %v1190 = vunpack.c.l.b16 %v1123
    %v1191 = vunpack.c.l.b16 %v1124
    %v1192 = vunpack.c.l.b16 %v1125
    %v1193 = vunpack.c.l.b16 %v1126
    %v1194 = vunpack.c.l.b16 %v1127
    %v1195 = vunpack.c.l.b16 %v1128
    %v1196 = vunpack.c.l.b16 %v1129
    %v1197 = vunpack.c.l.b16 %v1130
    %v1198 = vunpack.c.l.b16 %v1131
    %v1199 = vunpack.c.l.b16 %v1132
    %v1200 = vunpack.c.l.b16 %v1133
    %v1201 = vunpack.c.l.b16 %v1134
    %v1202 = vunpack.c.l.b16 %v1135
    %v1203 = vunpack.c.l.b16 %v1136
    %v1204 = vunpack.c.l.b16 %v1137
    %v1205 = vunpack.c.l.b16 %v1138
    %v1206 = vunpack.c.l.b16 %v1139
    %v1207 = vunpack.c.l.b16 %v1140
    %v1208 = vunpack.c.l.b16 %v1141
    %v1209 = vpack.c.b16 %v1178, %v1177
    %v1210 = vpack.c.b16 %v1180, %v1179
    %v1211 = vpack.c.b16 %v1182, %v1181
    %v1212 = vpack.c.b16 %v1184, %v1183
    %v1213 = vpack.c.b16 %v1186, %v1185
    %v1214 = vpack.c.b16 %v1188, %v1187
    %v1215 = vpack.c.b16 %v1190, %v1189
    %v1216 = vpack.c.b16 %v1192, %v1191
    %v1217 = vpack.c.b16 %v1194, %v1193
    %v1218 = vpack.c.b16 %v1196, %v1195
    %v1219 = vpack.c.b16 %v1198, %v1197
    %v1220 = vpack.c.b16 %v1200, %v1199
    %v1221 = vpack.c.b16 %v1202, %v1201
    %v1222 = vpack.c.b16 %v1204, %v1203
    %v1223 = vpack.c.b16 %v1206, %v1205
    %v1224 = vpack.c.b16 %v1208, %v1207
    %1241 = vmatprep.subr.bf16.mxu0 0
    %1242 = vmatpush1.bf16.msra.mxu0 %v1209
    %1243 = vmatprep.subr.bf16.mxu0 0
    %1244 = vmatpush1.bf16.msra.mxu0 %v1210
    %1245 = vmatprep.subr.bf16.mxu0 0
    %1246 = vmatpush1.bf16.msra.mxu0 %v1211
    %1247 = vmatprep.subr.bf16.mxu0 0
    %1248 = vmatpush1.bf16.msra.mxu0 %v1212
    %1249 = vmatprep.subr.bf16.mxu0 0
    %1250 = vmatpush1.bf16.msra.mxu0 %v1213
    %1251 = vmatprep.subr.bf16.mxu0 0
    %1252 = vmatpush1.bf16.msra.mxu0 %v1214
    %1253 = vmatprep.subr.bf16.mxu0 0
    %1254 = vmatpush1.bf16.msra.mxu0 %v1215
    %1255 = vmatprep.subr.bf16.mxu0 0
    %1256 = vmatpush1.bf16.msra.mxu0 %v1216
    %1257 = vmatprep.subr.bf16.mxu0 0
    %1258 = vmatpush1.bf16.msra.mxu0 %v1217
    %1259 = vmatprep.subr.bf16.mxu0 0
    %1260 = vmatpush1.bf16.msra.mxu0 %v1218
    %1261 = vmatprep.subr.bf16.mxu0 0
    %1262 = vmatpush1.bf16.msra.mxu0 %v1219
    %1263 = vmatprep.subr.bf16.mxu0 0
    %1264 = vmatpush1.bf16.msra.mxu0 %v1220
    %1265 = vmatprep.subr.bf16.mxu0 0
    %1266 = vmatpush1.bf16.msra.mxu0 %v1221
    %1267 = vmatprep.subr.bf16.mxu0 0
    %1268 = vmatpush1.bf16.msra.mxu0 %v1222
    %1269 = vmatprep.subr.bf16.mxu0 0
    %1270 = vmatpush1.bf16.msra.mxu0 %v1223
    %1271 = vmatprep.subr.bf16.mxu0 0
    %1272 = vmatpush1.bf16.msra.mxu0 %v1224
    %1273 = vmatprep.mubr.bf16.mxu0 %v1143
    %1274 = vmatmul.mubr.bf16.gmra.mrb[0].mxu0 %v1142
    %v1275 = vpop.f32.mrb[0].mxu0
    %v1276 = vadd.f32 %v1144, %v1275
    %v1277 = vpop.f32.mrb[0].mxu0
    %v1278 = vpop.f32.mrb[0].mxu0
    %v1279 = vadd.f32 %v1144, %v1278
    %v1280 = vpop.f32.mrb[0].mxu0
    %1281 = vdwg.mxu0
    %v1282 = vld [vmem:[%s1] sm:$0x1]
    %v1283 = vld [vmem:[%s1 + $0x1] sm:$0x1]
    %v1284 = vld [vmem:[%s5] sm:$0xff]
    %v1285 = vld [vmem:[%s5 + $0x8] sm:$0xff]
    %v1286 = vld [vmem:[%s6 + $0x12] ss:$0 sm:$0xff]
    %v1288 = vsel %vm94, %v1276, 0
    %v1291 = vsel %vm94, %v1279, 0
    %1293 = vmatprep.subr.mxu0 0.0
    %1294 = vmatpush1.msra.mxu0 %v1284
    %1295 = vmatprep.subr.mxu0 0.0
    %1296 = vmatpush1.msra.mxu0 %v1285
    %1297 = vmatprep.subr.mxu0 0.0
    %1298 = vmatpush1.msra.mxu0 0.0
    %1299 = vmatprep.subr.mxu0 0.0
    %1300 = vmatpush1.msra.mxu0 0.0
    %1301 = vmatprep.subr.mxu0 0.0
    %1302 = vmatpush1.msra.mxu0 0.0
    %1303 = vmatprep.subr.mxu0 0.0
    %1304 = vmatpush1.msra.mxu0 0.0
    %1305 = vmatprep.subr.mxu0 0.0
    %1306 = vmatpush1.msra.mxu0 0.0
    %1307 = vmatprep.subr.mxu0 0.0
    %1308 = vmatpush1.msra.mxu0 0.0
    %1309 = vmatprep.subr.mxu0 0.0
    %1310 = vmatpush1.msra.mxu0 0.0
    %1311 = vmatprep.subr.mxu0 0.0
    %1312 = vmatpush1.msra.mxu0 0.0
    %1313 = vmatprep.subr.mxu0 0.0
    %1314 = vmatpush1.msra.mxu0 0.0
    %1315 = vmatprep.subr.mxu0 0.0
    %1316 = vmatpush1.msra.mxu0 0.0
    %1317 = vmatprep.subr.mxu0 0.0
    %1318 = vmatpush1.msra.mxu0 0.0
    %1319 = vmatprep.subr.mxu0 0.0
    %1320 = vmatpush1.msra.mxu0 0.0
    %1321 = vmatprep.subr.mxu0 0.0
    %1322 = vmatpush1.msra.mxu0 0.0
    %1323 = vmatprep.subr.mxu0 0.0
    %1324 = vmatpush1.msra.mxu0 0.0
    %1325 = vmatprep.subr.mxu0 0.0
    %1326 = vmatpush1.msra.mxu0 0.0
    %1327 = vmatprep.subr.mxu0 0.0
    %1328 = vmatpush1.msra.mxu0 0.0
    %1329 = vmatprep.subr.mxu0 0.0
    %1330 = vmatpush1.msra.mxu0 0.0
    %1331 = vmatprep.subr.mxu0 0.0
    %1332 = vmatpush1.msra.mxu0 0.0
    %1333 = vmatprep.subr.mxu0 0.0
    %1334 = vmatpush1.msra.mxu0 0.0
    %1335 = vmatprep.subr.mxu0 0.0
    %1336 = vmatpush1.msra.mxu0 0.0
    %1337 = vmatprep.subr.mxu0 0.0
    %1338 = vmatpush1.msra.mxu0 0.0
    %1339 = vmatprep.subr.mxu0 0.0
    %1340 = vmatpush1.msra.mxu0 0.0
    %1341 = vmatprep.subr.mxu0 0.0
    %1342 = vmatpush1.msra.mxu0 0.0
    %1343 = vmatprep.subr.mxu0 0.0
    %1344 = vmatpush1.msra.mxu0 0.0
    %1345 = vmatprep.subr.mxu0 0.0
    %1346 = vmatpush1.msra.mxu0 0.0
    %1347 = vmatprep.subr.mxu0 0.0
    %1348 = vmatpush1.msra.mxu0 0.0
    %1349 = vmatprep.subr.mxu0 0.0
    %1350 = vmatpush1.msra.mxu0 0.0
    %1351 = vmatprep.subr.mxu0 0.0
    %1352 = vmatpush1.msra.mxu0 0.0
    %1353 = vmatprep.subr.mxu0 0.0
    %1354 = vmatpush1.msra.mxu0 0.0
    %1355 = vmatprep.subr.mxu0 0.0
    %1356 = vmatpush1.msra.mxu0 0.0
    %1357 = vmatprep.mubr.f32.mxu0 0.0
    %1358 = vmatmul.mubr.f32.gmra.mrb[0].mxu0 %v1288
    %v1359 = vpop.f32.mrb[0].mxu0
    %v1360 = vadd.f32 %v1286, %v1359
    %v1361 = vpop.f32.mrb[0].mxu0
    %1362 = vmatprep.mubr.f32.mxu0 0.0
    %1363 = vmatmul.mubr.f32.gmra.mrb[0].mxu0 %v1291
    %v1364 = vpop.f32.mrb[0].mxu0
    %v1365 = vadd.f32 %v1286, %v1364
    %v1366 = vpop.f32.mrb[0].mxu0
    %1367 = vdwg.mxu0
    %v1368 = vtanh.pop %v1360
    %v1369 = vtanh.pop %v1365
    %v1370 = vlaneseq
    %v1371 = vshrl.u32 %v1370, 7
    %v1372 = vsub.s32 0, %v1371
    %v1373 = vrot.slane %v1282, %v1372
    %v1374 = vmul.f32 %v1368, %v1373
    %v1375 = vmul.f32 %v1369, %v1373
    %v1376 = vlaneseq
    %v1377 = vshrl.u32 %v1376, 7
    %v1378 = vsub.s32 0, %v1377
    %v1379 = vrot.slane %v1283, %v1378
    %v1380 = vsub.f32 %v1374, %v1379
    %v1381 = vsub.f32 %v1375, %v1379
    %v1382 = vround.ne.pseudo %v1380
    %v1383 = vround.ne.pseudo %v1381
    %v1384 = vld [vmem:[%s5 + $0x10] sm:$0xff]
    %v1385 = vld [vmem:[%s6 + $0x13] ss:$0 sm:$0xff]
    %vm1386 = vcmask 64512
    %v1388 = vsel %vm1386, %v1382, 0
    %v1391 = vsel %vm1386, %v1383, 0
    %1393 = vmatprep.subr.mxu0 0.0
    %1394 = vmatpush1.msra.mxu0 %v1384
    %1395 = vmatprep.subr.mxu0 0.0
    %1396 = vmatpush1.msra.mxu0 0.0
    %1397 = vmatprep.subr.mxu0 0.0
    %1398 = vmatpush1.msra.mxu0 0.0
    %1399 = vmatprep.subr.mxu0 0.0
    %1400 = vmatpush1.msra.mxu0 0.0
    %1401 = vmatprep.subr.mxu0 0.0
    %1402 = vmatpush1.msra.mxu0 0.0
    %1403 = vmatprep.subr.mxu0 0.0
    %1404 = vmatpush1.msra.mxu0 0.0
    %1405 = vmatprep.subr.mxu0 0.0
    %1406 = vmatpush1.msra.mxu0 0.0
    %1407 = vmatprep.subr.mxu0 0.0
    %1408 = vmatpush1.msra.mxu0 0.0
    %1409 = vmatprep.subr.mxu0 0.0
    %1410 = vmatpush1.msra.mxu0 0.0
    %1411 = vmatprep.subr.mxu0 0.0
    %1412 = vmatpush1.msra.mxu0 0.0
    %1413 = vmatprep.subr.mxu0 0.0
    %1414 = vmatpush1.msra.mxu0 0.0
    %1415 = vmatprep.subr.mxu0 0.0
    %1416 = vmatpush1.msra.mxu0 0.0
    %1417 = vmatprep.subr.mxu0 0.0
    %1418 = vmatpush1.msra.mxu0 0.0
    %1419 = vmatprep.subr.mxu0 0.0
    %1420 = vmatpush1.msra.mxu0 0.0
    %1421 = vmatprep.subr.mxu0 0.0
    %1422 = vmatpush1.msra.mxu0 0.0
    %1423 = vmatprep.subr.mxu0 0.0
    %1424 = vmatpush1.msra.mxu0 0.0
    %1425 = vmatprep.subr.mxu0 0.0
    %1426 = vmatpush1.msra.mxu0 0.0
    %1427 = vmatprep.subr.mxu0 0.0
    %1428 = vmatpush1.msra.mxu0 0.0
    %1429 = vmatprep.subr.mxu0 0.0
    %1430 = vmatpush1.msra.mxu0 0.0
    %1431 = vmatprep.subr.mxu0 0.0
    %1432 = vmatpush1.msra.mxu0 0.0
    %1433 = vmatprep.subr.mxu0 0.0
    %1434 = vmatpush1.msra.mxu0 0.0
    %1435 = vmatprep.subr.mxu0 0.0
    %1436 = vmatpush1.msra.mxu0 0.0
    %1437 = vmatprep.subr.mxu0 0.0
    %1438 = vmatpush1.msra.mxu0 0.0
    %1439 = vmatprep.subr.mxu0 0.0
    %1440 = vmatpush1.msra.mxu0 0.0
    %1441 = vmatprep.subr.mxu0 0.0
    %1442 = vmatpush1.msra.mxu0 0.0
    %1443 = vmatprep.subr.mxu0 0.0
    %1444 = vmatpush1.msra.mxu0 0.0
    %1445 = vmatprep.subr.mxu0 0.0
    %1446 = vmatpush1.msra.mxu0 0.0
    %1447 = vmatprep.subr.mxu0 0.0
    %1448 = vmatpush1.msra.mxu0 0.0
    %1449 = vmatprep.subr.mxu0 0.0
    %1450 = vmatpush1.msra.mxu0 0.0
    %1451 = vmatprep.subr.mxu0 0.0
    %1452 = vmatpush1.msra.mxu0 0.0
    %1453 = vmatprep.subr.mxu0 0.0
    %1454 = vmatpush1.msra.mxu0 0.0
    %1455 = vmatprep.subr.mxu0 0.0
    %1456 = vmatpush1.msra.mxu0 0.0
    %1457 = vmatprep.mubr.f32.mxu0 0.0
    %1458 = vmatmul.mubr.f32.gmra.mrb[0].mxu0 %v1388
    %v1459 = vpop.f32.mrb[0].mxu0
    %v1460 = vadd.f32 %v1385, %v1459
    %v1461 = vpop.f32.mrb[0].mxu0
    %1462 = vmatprep.mubr.f32.mxu0 0.0
    %1463 = vmatmul.mubr.f32.gmra.mrb[0].mxu0 %v1391
    %v1464 = vpop.f32.mrb[0].mxu0
    %v1465 = vadd.f32 %v1385, %v1464
    %v1466 = vpop.f32.mrb[0].mxu0
    %1467 = vdwg.mxu0
    %v1468 = vpack.c.bf16 %v1465, %v1460
    %v1469 = vld [vmem:[#allocation7 + $0xcc] sm:$0xf]
    %v1470 = vld [vmem:[#allocation7 + $0xd0] sm:$0xf]
    %v1471 = vld [vmem:[#allocation7 + $0xd4] sm:$0x3]
    %v1473 = vsel %vm271, %v461, 0
    %v1476 = vsel %vm275, %v1471, 0
    %1478 = vmatprep.subr.bf16.mxu0 0
    %1479 = vmatpush1.bf16.msra.mxu0 %v1476
    %1480 = vmatprep.subr.bf16.mxu0 0
    %1481 = vmatpush1.bf16.msra.mxu0 0
    %1482 = vmatprep.subr.bf16.mxu0 0
    %1483 = vmatpush1.bf16.msra.mxu0 0
    %1484 = vmatprep.subr.bf16.mxu0 0
    %1485 = vmatpush1.bf16.msra.mxu0 0
    %1486 = vmatprep.subr.bf16.mxu0 0
    %1487 = vmatpush1.bf16.msra.mxu0 0
    %1488 = vmatprep.subr.bf16.mxu0 0
    %1489 = vmatpush1.bf16.msra.mxu0 0
    %1490 = vmatprep.subr.bf16.mxu0 0
    %1491 = vmatpush1.bf16.msra.mxu0 0
    %1492 = vmatprep.subr.bf16.mxu0 0
    %1493 = vmatpush1.bf16.msra.mxu0 0
    %1494 = vmatprep.subr.bf16.mxu0 0
    %1495 = vmatpush1.bf16.msra.mxu0 0
    %1496 = vmatprep.subr.bf16.mxu0 0
    %1497 = vmatpush1.bf16.msra.mxu0 0
    %1498 = vmatprep.subr.bf16.mxu0 0
    %1499 = vmatpush1.bf16.msra.mxu0 0
    %1500 = vmatprep.subr.bf16.mxu0 0
    %1501 = vmatpush1.bf16.msra.mxu0 0
    %1502 = vmatprep.subr.bf16.mxu0 0
    %1503 = vmatpush1.bf16.msra.mxu0 0
    %1504 = vmatprep.subr.bf16.mxu0 0
    %1505 = vmatpush1.bf16.msra.mxu0 0
    %1506 = vmatprep.subr.bf16.mxu0 0
    %1507 = vmatpush1.bf16.msra.mxu0 0
    %1508 = vmatprep.subr.bf16.mxu0 0
    %1509 = vmatpush1.bf16.msra.mxu0 0
    %1510 = vmatprep.mubr.bf16.mxu0 0
    %1511 = vmatmul.mubr.bf16.gmra.mrb[0].mxu0 %v1473
    %v1512 = vpop.f32.mrb[0].mxu0
    %v1513 = vadd.f32 0.0, %v1512
    %v1514 = vpop.f32.mrb[0].mxu0
    %v1515 = vpop.f32.mrb[0].mxu0
    %v1516 = vadd.f32 0.0, %v1515
    %v1517 = vpop.f32.mrb[0].mxu0
    %1518 = vdwg.mxu0
    %v1521 = vunpack.c.l.b16 %v1469
    %v1522 = vunpack.c.l.b16 %v1470
    %v1523 = vpack.c.b16 %v1522, %v1521
    %v1526 = vsel %vm94, %v1468, 0
    %1528 = vmatprep.subr.bf16.mxu0 0
    %1529 = vmatpush1.bf16.msra.mxu0 %v1523
    %1530 = vmatprep.subr.bf16.mxu0 0
    %1531 = vmatpush1.bf16.msra.mxu0 0
    %1532 = vmatprep.subr.bf16.mxu0 0
    %1533 = vmatpush1.bf16.msra.mxu0 0
    %1534 = vmatprep.subr.bf16.mxu0 0
    %1535 = vmatpush1.bf16.msra.mxu0 0
    %1536 = vmatprep.subr.bf16.mxu0 0
    %1537 = vmatpush1.bf16.msra.mxu0 0
    %1538 = vmatprep.subr.bf16.mxu0 0
    %1539 = vmatpush1.bf16.msra.mxu0 0
    %1540 = vmatprep.subr.bf16.mxu0 0
    %1541 = vmatpush1.bf16.msra.mxu0 0
    %1542 = vmatprep.subr.bf16.mxu0 0
    %1543 = vmatpush1.bf16.msra.mxu0 0
    %1544 = vmatprep.subr.bf16.mxu0 0
    %1545 = vmatpush1.bf16.msra.mxu0 0
    %1546 = vmatprep.subr.bf16.mxu0 0
    %1547 = vmatpush1.bf16.msra.mxu0 0
    %1548 = vmatprep.subr.bf16.mxu0 0
    %1549 = vmatpush1.bf16.msra.mxu0 0
    %1550 = vmatprep.subr.bf16.mxu0 0
    %1551 = vmatpush1.bf16.msra.mxu0 0
    %1552 = vmatprep.subr.bf16.mxu0 0
    %1553 = vmatpush1.bf16.msra.mxu0 0
    %1554 = vmatprep.subr.bf16.mxu0 0
    %1555 = vmatpush1.bf16.msra.mxu0 0
    %1556 = vmatprep.subr.bf16.mxu0 0
    %1557 = vmatpush1.bf16.msra.mxu0 0
    %1558 = vmatprep.subr.bf16.mxu0 0
    %1559 = vmatpush1.bf16.msra.mxu0 0
    %1560 = vmatprep.mubr.bf16.mxu0 0
    %1561 = vmatmul.mubr.bf16.gmra.mrb[0].mxu0 %v1526
    %v1562 = vpop.f32.mrb[0].mxu0
    %v1563 = vadd.f32 %v1513, %v1562
    %v1564 = vpop.f32.mrb[0].mxu0
    %v1565 = vpop.f32.mrb[0].mxu0
    %v1566 = vadd.f32 %v1516, %v1565
    %v1567 = vpop.f32.mrb[0].mxu0
    %1568 = vdwg.mxu0
    %v1569 = vld [vmem:[%s6 + $0x14] ss:$0 sm:$0xff]
    %v1570 = vadd.f32 %v1563, %v1569
    %v1571 = vadd.f32 %v1566, %v1569
    %v1572 = vmax.f32 %v1570, 0.0
    %v1573 = vmax.f32 %v1571, 0.0
    %v1574 = vld [vmem:[#allocation7 + $0xd8] sm:$0xf]
    %v1575 = vld [vmem:[#allocation7 + $0xdc] sm:$0xf]
    %v1576 = vld [vmem:[#allocation7 + $0xe0] sm:$0xf]
    %v1577 = vld [vmem:[#allocation7 + $0xe4] sm:$0xf]
    %v1578 = vpack.c.bf16 %v1573, %v1572
    %v1579 = vld [vmem:[%s6 + $0x15] ss:$0 sm:$0xff]
    %v1584 = vunpack.c.l.b16 %v1574
    %v1585 = vunpack.c.l.b16 %v1575
    %v1586 = vunpack.c.l.b16 %v1576
    %v1587 = vunpack.c.l.b16 %v1577
    %v1588 = vpack.c.b16 %v1585, %v1584
    %v1589 = vpack.c.b16 %v1587, %v1586
    %v1593 = vsel %vm159, %v1578, 0
    %1595 = vmatprep.subr.bf16.mxu0 0
    %1596 = vmatpush1.bf16.msra.mxu0 %v1588
    %1597 = vmatprep.subr.bf16.mxu0 0
    %1598 = vmatpush1.bf16.msra.mxu0 %v1589
    %1599 = vmatprep.subr.bf16.mxu0 0
    %1600 = vmatpush1.bf16.msra.mxu0 0
    %1601 = vmatprep.subr.bf16.mxu0 0
    %1602 = vmatpush1.bf16.msra.mxu0 0
    %1603 = vmatprep.subr.bf16.mxu0 0
    %1604 = vmatpush1.bf16.msra.mxu0 0
    %1605 = vmatprep.subr.bf16.mxu0 0
    %1606 = vmatpush1.bf16.msra.mxu0 0
    %1607 = vmatprep.subr.bf16.mxu0 0
    %1608 = vmatpush1.bf16.msra.mxu0 0
    %1609 = vmatprep.subr.bf16.mxu0 0
    %1610 = vmatpush1.bf16.msra.mxu0 0
    %1611 = vmatprep.subr.bf16.mxu0 0
    %1612 = vmatpush1.bf16.msra.mxu0 0
    %1613 = vmatprep.subr.bf16.mxu0 0
    %1614 = vmatpush1.bf16.msra.mxu0 0
    %1615 = vmatprep.subr.bf16.mxu0 0
    %1616 = vmatpush1.bf16.msra.mxu0 0
    %1617 = vmatprep.subr.bf16.mxu0 0
    %1618 = vmatpush1.bf16.msra.mxu0 0
    %1619 = vmatprep.subr.bf16.mxu0 0
    %1620 = vmatpush1.bf16.msra.mxu0 0
    %1621 = vmatprep.subr.bf16.mxu0 0
    %1622 = vmatpush1.bf16.msra.mxu0 0
    %1623 = vmatprep.subr.bf16.mxu0 0
    %1624 = vmatpush1.bf16.msra.mxu0 0
    %1625 = vmatprep.subr.bf16.mxu0 0
    %1626 = vmatpush1.bf16.msra.mxu0 0
    %1627 = vmatprep.mubr.bf16.mxu0 0
    %1628 = vmatmul.mubr.bf16.gmra.mrb[0].mxu0 %v1593
    %v1629 = vpop.f32.mrb[0].mxu0
    %v1630 = vadd.f32 %v1579, %v1629
    %v1631 = vpop.f32.mrb[0].mxu0
    %v1632 = vpop.f32.mrb[0].mxu0
    %v1633 = vadd.f32 %v1579, %v1632
    %v1634 = vpop.f32.mrb[0].mxu0
    %1635 = vdwg.mxu0
    %v1636 = vmax.f32 %v1630, 0.0
    %v1637 = vmax.f32 %v1633, 0.0
    %v1638 = vld [vmem:[#allocation7 + $0xe8] sm:$0xf]
    %v1639 = vld [vmem:[#allocation7 + $0xec] sm:$0xf]
    %v1640 = vld [vmem:[#allocation7 + $0xf0] sm:$0xf]
    %v1641 = vld [vmem:[#allocation7 + $0xf4] sm:$0xf]
    %v1642 = vpack.c.bf16 %v1637, %v1636
    %v1643 = vld [vmem:[%s6 + $0x16] ss:$0 sm:$0xff]
    %v1648 = vunpack.c.l.b16 %v1638
    %v1649 = vunpack.c.l.b16 %v1639
    %v1650 = vunpack.c.l.b16 %v1640
    %v1651 = vunpack.c.l.b16 %v1641
    %v1652 = vpack.c.b16 %v1649, %v1648
    %v1653 = vpack.c.b16 %v1651, %v1650
    %v1657 = vsel %vm159, %v1642, 0
    %1659 = vmatprep.subr.bf16.mxu0 0
    %1660 = vmatpush1.bf16.msra.mxu0 %v1652
    %1661 = vmatprep.subr.bf16.mxu0 0
    %1662 = vmatpush1.bf16.msra.mxu0 %v1653
    %1663 = vmatprep.subr.bf16.mxu0 0
    %1664 = vmatpush1.bf16.msra.mxu0 0
    %1665 = vmatprep.subr.bf16.mxu0 0
    %1666 = vmatpush1.bf16.msra.mxu0 0
    %1667 = vmatprep.subr.bf16.mxu0 0
    %1668 = vmatpush1.bf16.msra.mxu0 0
    %1669 = vmatprep.subr.bf16.mxu0 0
    %1670 = vmatpush1.bf16.msra.mxu0 0
    %1671 = vmatprep.subr.bf16.mxu0 0
    %1672 = vmatpush1.bf16.msra.mxu0 0
    %1673 = vmatprep.subr.bf16.mxu0 0
    %1674 = vmatpush1.bf16.msra.mxu0 0
    %1675 = vmatprep.subr.bf16.mxu0 0
    %1676 = vmatpush1.bf16.msra.mxu0 0
    %1677 = vmatprep.subr.bf16.mxu0 0
    %1678 = vmatpush1.bf16.msra.mxu0 0
    %1679 = vmatprep.subr.bf16.mxu0 0
    %1680 = vmatpush1.bf16.msra.mxu0 0
    %1681 = vmatprep.subr.bf16.mxu0 0
    %1682 = vmatpush1.bf16.msra.mxu0 0
    %1683 = vmatprep.subr.bf16.mxu0 0
    %1684 = vmatpush1.bf16.msra.mxu0 0
    %1685 = vmatprep.subr.bf16.mxu0 0
    %1686 = vmatpush1.bf16.msra.mxu0 0
    %1687 = vmatprep.subr.bf16.mxu0 0
    %1688 = vmatpush1.bf16.msra.mxu0 0
    %1689 = vmatprep.subr.bf16.mxu0 0
    %1690 = vmatpush1.bf16.msra.mxu0 0
    %1691 = vmatprep.mubr.bf16.mxu0 0
    %1692 = vmatmul.mubr.bf16.gmra.mrb[0].mxu0 %v1657
    %v1693 = vpop.f32.mrb[0].mxu0
    %v1694 = vadd.f32 %v1643, %v1693
    %v1695 = vpop.f32.mrb[0].mxu0
    %v1696 = vpop.f32.mrb[0].mxu0
    %v1697 = vadd.f32 %v1643, %v1696
    %v1698 = vpop.f32.mrb[0].mxu0
    %1699 = vdwg.mxu0
    %v1700 = vld [vmem:[#allocation6 + $0x10] sm:$0xff]
    %v1701 = vld [vmem:[#allocation6 + $0x18] sm:$0xff]
    %v1702 = vld [vmem:[#allocation6 + $0x20] sm:$0xff]
    %v1703 = vld [vmem:[#allocation6 + $0x28] sm:$0xff]
    %v1706 = vunpack.c.l.b16 %v1702
    %v1707 = vunpack.c.h.b16 %v1702
    %v1708 = vunpack.c.l.b16 %v1703
    %v1709 = vunpack.c.h.b16 %v1703
    %v1710 = vpack.c.b16 %v1708, %v1706
    %v1711 = vpack.c.b16 %v1709, %v1707
    %v1715 = vsel %vm94, %v466, 0
    %1717 = vmatprep.subr.bf16.mxu0 %v1711
    %1718 = vmatpush1.bf16.msra.mxu0 %v1710
    %1719 = vmatprep.subr.bf16.mxu0 0
    %1720 = vmatpush1.bf16.msra.mxu0 0
    %1721 = vmatprep.subr.bf16.mxu0 0
    %1722 = vmatpush1.bf16.msra.mxu0 0
    %1723 = vmatprep.subr.bf16.mxu0 0
    %1724 = vmatpush1.bf16.msra.mxu0 0
    %1725 = vmatprep.subr.bf16.mxu0 0
    %1726 = vmatpush1.bf16.msra.mxu0 0
    %1727 = vmatprep.subr.bf16.mxu0 0
    %1728 = vmatpush1.bf16.msra.mxu0 0
    %1729 = vmatprep.subr.bf16.mxu0 0
    %1730 = vmatpush1.bf16.msra.mxu0 0
    %1731 = vmatprep.subr.bf16.mxu0 0
    %1732 = vmatpush1.bf16.msra.mxu0 0
    %1733 = vmatprep.subr.bf16.mxu0 0
    %1734 = vmatpush1.bf16.msra.mxu0 0
    %1735 = vmatprep.subr.bf16.mxu0 0
    %1736 = vmatpush1.bf16.msra.mxu0 0
    %1737 = vmatprep.subr.bf16.mxu0 0
    %1738 = vmatpush1.bf16.msra.mxu0 0
    %1739 = vmatprep.subr.bf16.mxu0 0
    %1740 = vmatpush1.bf16.msra.mxu0 0
    %1741 = vmatprep.subr.bf16.mxu0 0
    %1742 = vmatpush1.bf16.msra.mxu0 0
    %1743 = vmatprep.subr.bf16.mxu0 0
    %1744 = vmatpush1.bf16.msra.mxu0 0
    %1745 = vmatprep.subr.bf16.mxu0 0
    %1746 = vmatpush1.bf16.msra.mxu0 0
    %1747 = vmatprep.subr.bf16.mxu0 0
    %1748 = vmatpush1.bf16.msra.mxu0 0
    %1749 = vmatprep.mubr.bf16.mxu0 0
    %1750 = vmatmul.mubr.bf16.gmra.mrb[0].mxu0 %v1715
    %v1751 = vpop.f32.mrb[0].mxu0
    %v1752 = vadd.f32 0.0, %v1751
    %v1753 = vpop.f32.mrb[0].mxu0
    %v1754 = vadd.f32 0.0, %v1753
    %v1755 = vpop.f32.mrb[0].mxu0
    %v1756 = vadd.f32 0.0, %v1755
    %v1757 = vpop.f32.mrb[0].mxu0
    %v1758 = vadd.f32 0.0, %v1757
    %1759 = vdwg.mxu0
    %v1762 = vunpack.c.l.b16 %v1700
    %v1763 = vunpack.c.h.b16 %v1700
    %v1764 = vunpack.c.l.b16 %v1701
    %v1765 = vunpack.c.h.b16 %v1701
    %v1766 = vpack.c.b16 %v1764, %v1762
    %v1767 = vpack.c.b16 %v1765, %v1763
    %1770 = vmatprep.subr.bf16.mxu0 %v1767
    %1771 = vmatpush1.bf16.msra.mxu0 %v1766
    %1772 = vmatprep.subr.bf16.mxu0 0
    %1773 = vmatpush1.bf16.msra.mxu0 0
    %1774 = vmatprep.subr.bf16.mxu0 0
    %1775 = vmatpush1.bf16.msra.mxu0 0
    %1776 = vmatprep.subr.bf16.mxu0 0
    %1777 = vmatpush1.bf16.msra.mxu0 0
    %1778 = vmatprep.subr.bf16.mxu0 0
    %1779 = vmatpush1.bf16.msra.mxu0 0
    %1780 = vmatprep.subr.bf16.mxu0 0
    %1781 = vmatpush1.bf16.msra.mxu0 0
    %1782 = vmatprep.subr.bf16.mxu0 0
    %1783 = vmatpush1.bf16.msra.mxu0 0
    %1784 = vmatprep.subr.bf16.mxu0 0
    %1785 = vmatpush1.bf16.msra.mxu0 0
    %1786 = vmatprep.subr.bf16.mxu0 0
    %1787 = vmatpush1.bf16.msra.mxu0 0
    %1788 = vmatprep.subr.bf16.mxu0 0
    %1789 = vmatpush1.bf16.msra.mxu0 0
    %1790 = vmatprep.subr.bf16.mxu0 0
    %1791 = vmatpush1.bf16.msra.mxu0 0
    %1792 = vmatprep.subr.bf16.mxu0 0
    %1793 = vmatpush1.bf16.msra.mxu0 0
    %1794 = vmatprep.subr.bf16.mxu0 0
    %1795 = vmatpush1.bf16.msra.mxu0 0
    %1796 = vmatprep.subr.bf16.mxu0 0
    %1797 = vmatpush1.bf16.msra.mxu0 0
    %1798 = vmatprep.subr.bf16.mxu0 0
    %1799 = vmatpush1.bf16.msra.mxu0 0
    %1800 = vmatprep.subr.bf16.mxu0 0
    %1801 = vmatpush1.bf16.msra.mxu0 0
    %1802 = vmatprep.mubr.bf16.mxu0 0
    %1803 = vmatmul.mubr.bf16.gmra.mrb[0].mxu0 %v1526
    %v1804 = vpop.f32.mrb[0].mxu0
    %v1805 = vadd.f32 %v1752, %v1804
    %v1806 = vpop.f32.mrb[0].mxu0
    %v1807 = vadd.f32 %v1754, %v1806
    %v1808 = vpop.f32.mrb[0].mxu0
    %v1809 = vadd.f32 %v1756, %v1808
    %v1810 = vpop.f32.mrb[0].mxu0
    %v1811 = vadd.f32 %v1758, %v1810
    %1812 = vdwg.mxu0
    %s1813 = scalar_lea.vmem %s6, 23
    %v1814 = vld [vmem:[%s1813] ss:$8 sm:$0x3]
    %v1816 = vlaneseq
    %v1817 = vshrl.u32 %v1816, 7
    %v1818 = vsub.s32 0, %v1817
    %v1819 = vrot.slane %v1814, %v1818
    %v1820 = vlaneseq
    %v1821 = vshrl.u32 %v1820, 7
    %v1822 = vsub.s32 1, %v1821
    %v1823 = vrot.slane %v1814, %v1822
    %v1826 = vadd.f32 %v1805, %v1819
    %v1827 = vadd.f32 %v1807, %v1823
    %v1828 = vadd.f32 %v1809, %v1819
    %v1829 = vadd.f32 %v1811, %v1823
    %v1830 = vmax.f32 %v1826, 0.0
    %v1831 = vmax.f32 %v1827, 0.0
    %v1832 = vmax.f32 %v1828, 0.0
    %v1833 = vmax.f32 %v1829, 0.0
    %s1834 = scalar_lea.vmem [#allocation4], 512
    %v1835 = vld [vmem:[%s1834] sm:$0xff]
    %v1836 = vld [vmem:[%s1834 + $0x8] sm:$0xff]
    %v1837 = vld [vmem:[%s1834 + $0x10] sm:$0xff]
    %v1838 = vld [vmem:[%s1834 + $0x18] sm:$0xff]
    %v1839 = vld [vmem:[%s1834 + $0x20] sm:$0xff]
    %v1840 = vld [vmem:[%s1834 + $0x28] sm:$0xff]
    %v1841 = vld [vmem:[%s1834 + $0x30] sm:$0xff]
    %v1842 = vld [vmem:[%s1834 + $0x38] sm:$0xff]
    %v1843 = vld [vmem:[%s1834 + $0x40] sm:$0xff]
    %v1844 = vld [vmem:[%s1834 + $0x48] sm:$0xff]
    %v1845 = vld [vmem:[%s1834 + $0x50] sm:$0xff]
    %v1846 = vld [vmem:[%s1834 + $0x58] sm:$0xff]
    %v1847 = vld [vmem:[%s1834 + $0x60] sm:$0xff]
    %v1848 = vld [vmem:[%s1834 + $0x68] sm:$0xff]
    %v1849 = vld [vmem:[%s1834 + $0x70] sm:$0xff]
    %v1850 = vld [vmem:[%s1834 + $0x78] sm:$0xff]
    %v1851 = vld [vmem:[%s1834 + $0x80] sm:$0xff]
    %v1852 = vld [vmem:[%s1834 + $0x88] sm:$0xff]
    %v1853 = vld [vmem:[%s1834 + $0x90] sm:$0xff]
    %v1854 = vld [vmem:[%s1834 + $0x98] sm:$0xff]
    %v1855 = vld [vmem:[%s1834 + $0xa0] sm:$0xff]
    %v1856 = vld [vmem:[%s1834 + $0xa8] sm:$0xff]
    %v1857 = vld [vmem:[%s1834 + $0xb0] sm:$0xff]
    %v1858 = vld [vmem:[%s1834 + $0xb8] sm:$0xff]
    %v1859 = vld [vmem:[%s1834 + $0xc0] sm:$0xff]
    %v1860 = vld [vmem:[%s1834 + $0xc8] sm:$0xff]
    %v1861 = vld [vmem:[%s1834 + $0xd0] sm:$0xff]
    %v1862 = vld [vmem:[%s1834 + $0xd8] sm:$0xff]
    %v1863 = vld [vmem:[%s1834 + $0xe0] sm:$0xff]
    %v1864 = vld [vmem:[%s1834 + $0xe8] sm:$0xff]
    %v1865 = vld [vmem:[%s1834 + $0xf0] sm:$0xff]
    %v1866 = vld [vmem:[%s1834 + $0xf8] sm:$0xff]
    %v1867 = vpack.c.bf16 %v1832, %v1830
    %v1868 = vpack.c.bf16 %v1833, %v1831
    %s1869 = scalar_lea.vmem %s6, 32
    %v1870 = vld [vmem:[%s1869] ss:$8 sm:$0x3]
    %v1872 = vlaneseq
    %v1873 = vshrl.u32 %v1872, 7
    %v1874 = vsub.s32 0, %v1873
    %v1875 = vrot.slane %v1870, %v1874
    %v1876 = vlaneseq
    %v1877 = vshrl.u32 %v1876, 7
    %v1878 = vsub.s32 1, %v1877
    %v1879 = vrot.slane %v1870, %v1878
    %v1914 = vunpack.c.l.b16 %v1835
    %v1915 = vunpack.c.h.b16 %v1835
    %v1916 = vunpack.c.l.b16 %v1836
    %v1917 = vunpack.c.h.b16 %v1836
    %v1918 = vunpack.c.l.b16 %v1837
    %v1919 = vunpack.c.h.b16 %v1837
    %v1920 = vunpack.c.l.b16 %v1838
    %v1921 = vunpack.c.h.b16 %v1838
    %v1922 = vunpack.c.l.b16 %v1839
    %v1923 = vunpack.c.h.b16 %v1839
    %v1924 = vunpack.c.l.b16 %v1840
    %v1925 = vunpack.c.h.b16 %v1840
    %v1926 = vunpack.c.l.b16 %v1841
    %v1927 = vunpack.c.h.b16 %v1841
    %v1928 = vunpack.c.l.b16 %v1842
    %v1929 = vunpack.c.h.b16 %v1842
    %v1930 = vunpack.c.l.b16 %v1843
    %v1931 = vunpack.c.h.b16 %v1843
    %v1932 = vunpack.c.l.b16 %v1844
    %v1933 = vunpack.c.h.b16 %v1844
    %v1934 = vunpack.c.l.b16 %v1845
    %v1935 = vunpack.c.h.b16 %v1845
    %v1936 = vunpack.c.l.b16 %v1846
    %v1937 = vunpack.c.h.b16 %v1846
    %v1938 = vunpack.c.l.b16 %v1847
    %v1939 = vunpack.c.h.b16 %v1847
    %v1940 = vunpack.c.l.b16 %v1848
    %v1941 = vunpack.c.h.b16 %v1848
    %v1942 = vunpack.c.l.b16 %v1849
    %v1943 = vunpack.c.h.b16 %v1849
    %v1944 = vunpack.c.l.b16 %v1850
    %v1945 = vunpack.c.h.b16 %v1850
    %v1946 = vunpack.c.l.b16 %v1851
    %v1947 = vunpack.c.h.b16 %v1851
    %v1948 = vunpack.c.l.b16 %v1852
    %v1949 = vunpack.c.h.b16 %v1852
    %v1950 = vunpack.c.l.b16 %v1853
    %v1951 = vunpack.c.h.b16 %v1853
    %v1952 = vunpack.c.l.b16 %v1854
    %v1953 = vunpack.c.h.b16 %v1854
    %v1954 = vunpack.c.l.b16 %v1855
    %v1955 = vunpack.c.h.b16 %v1855
    %v1956 = vunpack.c.l.b16 %v1856
    %v1957 = vunpack.c.h.b16 %v1856
    %v1958 = vunpack.c.l.b16 %v1857
    %v1959 = vunpack.c.h.b16 %v1857
    %v1960 = vunpack.c.l.b16 %v1858
    %v1961 = vunpack.c.h.b16 %v1858
    %v1962 = vunpack.c.l.b16 %v1859
    %v1963 = vunpack.c.h.b16 %v1859
    %v1964 = vunpack.c.l.b16 %v1860
    %v1965 = vunpack.c.h.b16 %v1860
    %v1966 = vunpack.c.l.b16 %v1861
    %v1967 = vunpack.c.h.b16 %v1861
    %v1968 = vunpack.c.l.b16 %v1862
    %v1969 = vunpack.c.h.b16 %v1862
    %v1970 = vunpack.c.l.b16 %v1863
    %v1971 = vunpack.c.h.b16 %v1863
    %v1972 = vunpack.c.l.b16 %v1864
    %v1973 = vunpack.c.h.b16 %v1864
    %v1974 = vunpack.c.l.b16 %v1865
    %v1975 = vunpack.c.h.b16 %v1865
    %v1976 = vunpack.c.l.b16 %v1866
    %v1977 = vunpack.c.h.b16 %v1866
    %v1978 = vpack.c.b16 %v1916, %v1914
    %v1979 = vpack.c.b16 %v1917, %v1915
    %v1980 = vpack.c.b16 %v1920, %v1918
    %v1981 = vpack.c.b16 %v1921, %v1919
    %v1982 = vpack.c.b16 %v1924, %v1922
    %v1983 = vpack.c.b16 %v1925, %v1923
    %v1984 = vpack.c.b16 %v1928, %v1926
    %v1985 = vpack.c.b16 %v1929, %v1927
    %v1986 = vpack.c.b16 %v1932, %v1930
    %v1987 = vpack.c.b16 %v1933, %v1931
    %v1988 = vpack.c.b16 %v1936, %v1934
    %v1989 = vpack.c.b16 %v1937, %v1935
    %v1990 = vpack.c.b16 %v1940, %v1938
    %v1991 = vpack.c.b16 %v1941, %v1939
    %v1992 = vpack.c.b16 %v1944, %v1942
    %v1993 = vpack.c.b16 %v1945, %v1943
    %v1994 = vpack.c.b16 %v1948, %v1946
    %v1995 = vpack.c.b16 %v1949, %v1947
    %v1996 = vpack.c.b16 %v1952, %v1950
    %v1997 = vpack.c.b16 %v1953, %v1951
    %v1998 = vpack.c.b16 %v1956, %v1954
    %v1999 = vpack.c.b16 %v1957, %v1955
    %v2000 = vpack.c.b16 %v1960, %v1958
    %v2001 = vpack.c.b16 %v1961, %v1959
    %v2002 = vpack.c.b16 %v1964, %v1962
    %v2003 = vpack.c.b16 %v1965, %v1963
    %v2004 = vpack.c.b16 %v1968, %v1966
    %v2005 = vpack.c.b16 %v1969, %v1967
    %v2006 = vpack.c.b16 %v1972, %v1970
    %v2007 = vpack.c.b16 %v1973, %v1971
    %v2008 = vpack.c.b16 %v1976, %v1974
    %v2009 = vpack.c.b16 %v1977, %v1975
    %2042 = vmatprep.subr.bf16.mxu0 %v1979
    %2043 = vmatpush1.bf16.msra.mxu0 %v1978
    %2044 = vmatprep.subr.bf16.mxu0 %v1981
    %2045 = vmatpush1.bf16.msra.mxu0 %v1980
    %2046 = vmatprep.subr.bf16.mxu0 %v1983
    %2047 = vmatpush1.bf16.msra.mxu0 %v1982
    %2048 = vmatprep.subr.bf16.mxu0 %v1985
    %2049 = vmatpush1.bf16.msra.mxu0 %v1984
    %2050 = vmatprep.subr.bf16.mxu0 %v1987
    %2051 = vmatpush1.bf16.msra.mxu0 %v1986
    %2052 = vmatprep.subr.bf16.mxu0 %v1989
    %2053 = vmatpush1.bf16.msra.mxu0 %v1988
    %2054 = vmatprep.subr.bf16.mxu0 %v1991
    %2055 = vmatpush1.bf16.msra.mxu0 %v1990
    %2056 = vmatprep.subr.bf16.mxu0 %v1993
    %2057 = vmatpush1.bf16.msra.mxu0 %v1992
    %2058 = vmatprep.subr.bf16.mxu0 %v1995
    %2059 = vmatpush1.bf16.msra.mxu0 %v1994
    %2060 = vmatprep.subr.bf16.mxu0 %v1997
    %2061 = vmatpush1.bf16.msra.mxu0 %v1996
    %2062 = vmatprep.subr.bf16.mxu0 %v1999
    %2063 = vmatpush1.bf16.msra.mxu0 %v1998
    %2064 = vmatprep.subr.bf16.mxu0 %v2001
    %2065 = vmatpush1.bf16.msra.mxu0 %v2000
    %2066 = vmatprep.subr.bf16.mxu0 %v2003
    %2067 = vmatpush1.bf16.msra.mxu0 %v2002
    %2068 = vmatprep.subr.bf16.mxu0 %v2005
    %2069 = vmatpush1.bf16.msra.mxu0 %v2004
    %2070 = vmatprep.subr.bf16.mxu0 %v2007
    %2071 = vmatpush1.bf16.msra.mxu0 %v2006
    %2072 = vmatprep.subr.bf16.mxu0 %v2009
    %2073 = vmatpush1.bf16.msra.mxu0 %v2008
    %2074 = vmatprep.mubr.bf16.mxu0 %v1868
    %2075 = vmatmul.mubr.bf16.gmra.mrb[0].mxu0 %v1867
    %v2076 = vpop.f32.mrb[0].mxu0
    %v2077 = vadd.f32 %v1875, %v2076
    %v2078 = vpop.f32.mrb[0].mxu0
    %v2079 = vadd.f32 %v1879, %v2078
    %v2080 = vpop.f32.mrb[0].mxu0
    %v2081 = vadd.f32 %v1875, %v2080
    %v2082 = vpop.f32.mrb[0].mxu0
    %v2083 = vadd.f32 %v1879, %v2082
    %2084 = vdwg.mxu0
    %v2085 = vmax.f32 %v2077, 0.0
    %v2086 = vmax.f32 %v2079, 0.0
    %v2087 = vmax.f32 %v2081, 0.0
    %v2088 = vmax.f32 %v2083, 0.0
    %v2089 = vld [vmem:[#allocation7 + $0xf8] sm:$0xf]
    %v2090 = vld [vmem:[#allocation7 + $0xfc] sm:$0xf]
    %v2091 = vld [vmem:[#allocation7 + $0x100] sm:$0xf]
    %v2092 = vld [vmem:[#allocation7 + $0x104] sm:$0xf]
    %v2093 = vld [vmem:[#allocation7 + $0x108] sm:$0xf]
    %v2094 = vld [vmem:[#allocation7 + $0x10c] sm:$0xf]
    %v2095 = vld [vmem:[#allocation7 + $0x110] sm:$0xf]
    %v2096 = vld [vmem:[#allocation7 + $0x114] sm:$0xf]
    %v2097 = vld [vmem:[#allocation7 + $0x118] sm:$0xf]
    %v2098 = vld [vmem:[#allocation7 + $0x11c] sm:$0xf]
    %v2099 = vld [vmem:[#allocation7 + $0x120] sm:$0xf]
    %v2100 = vld [vmem:[#allocation7 + $0x124] sm:$0xf]
    %v2101 = vld [vmem:[#allocation7 + $0x128] sm:$0xf]
    %v2102 = vld [vmem:[#allocation7 + $0x12c] sm:$0xf]
    %v2103 = vld [vmem:[#allocation7 + $0x130] sm:$0xf]
    %v2104 = vld [vmem:[#allocation7 + $0x134] sm:$0xf]
    %v2105 = vld [vmem:[#allocation7 + $0x138] sm:$0xf]
    %v2106 = vld [vmem:[#allocation7 + $0x13c] sm:$0xf]
    %v2107 = vld [vmem:[#allocation7 + $0x140] sm:$0xf]
    %v2108 = vld [vmem:[#allocation7 + $0x144] sm:$0xf]
    %v2109 = vld [vmem:[#allocation7 + $0x148] sm:$0xf]
    %v2110 = vld [vmem:[#allocation7 + $0x14c] sm:$0xf]
    %v2111 = vld [vmem:[#allocation7 + $0x150] sm:$0xf]
    %v2112 = vld [vmem:[#allocation7 + $0x154] sm:$0xf]
    %v2113 = vld [vmem:[#allocation7 + $0x158] sm:$0xf]
    %v2114 = vld [vmem:[#allocation7 + $0x15c] sm:$0xf]
    %v2115 = vld [vmem:[#allocation7 + $0x160] sm:$0xf]
    %v2116 = vld [vmem:[#allocation7 + $0x164] sm:$0xf]
    %v2117 = vld [vmem:[#allocation7 + $0x168] sm:$0xf]
    %v2118 = vld [vmem:[#allocation7 + $0x16c] sm:$0xf]
    %v2119 = vld [vmem:[#allocation7 + $0x170] sm:$0xf]
    %v2120 = vld [vmem:[#allocation7 + $0x174] sm:$0xf]
    %v2121 = vpack.c.bf16 %v2087, %v2085
    %v2122 = vpack.c.bf16 %v2088, %v2086
    %v2123 = vld [vmem:[%s6 + $0x21] ss:$0 sm:$0xff]
    %v2156 = vunpack.c.l.b16 %v2089
    %v2157 = vunpack.c.l.b16 %v2090
    %v2158 = vunpack.c.l.b16 %v2091
    %v2159 = vunpack.c.l.b16 %v2092
    %v2160 = vunpack.c.l.b16 %v2093
    %v2161 = vunpack.c.l.b16 %v2094
    %v2162 = vunpack.c.l.b16 %v2095
    %v2163 = vunpack.c.l.b16 %v2096
    %v2164 = vunpack.c.l.b16 %v2097
    %v2165 = vunpack.c.l.b16 %v2098
    %v2166 = vunpack.c.l.b16 %v2099
    %v2167 = vunpack.c.l.b16 %v2100
    %v2168 = vunpack.c.l.b16 %v2101
    %v2169 = vunpack.c.l.b16 %v2102
    %v2170 = vunpack.c.l.b16 %v2103
    %v2171 = vunpack.c.l.b16 %v2104
    %v2172 = vunpack.c.l.b16 %v2105
    %v2173 = vunpack.c.l.b16 %v2106
    %v2174 = vunpack.c.l.b16 %v2107
    %v2175 = vunpack.c.l.b16 %v2108
    %v2176 = vunpack.c.l.b16 %v2109
    %v2177 = vunpack.c.l.b16 %v2110
    %v2178 = vunpack.c.l.b16 %v2111
    %v2179 = vunpack.c.l.b16 %v2112
    %v2180 = vunpack.c.l.b16 %v2113
    %v2181 = vunpack.c.l.b16 %v2114
    %v2182 = vunpack.c.l.b16 %v2115
    %v2183 = vunpack.c.l.b16 %v2116
    %v2184 = vunpack.c.l.b16 %v2117
    %v2185 = vunpack.c.l.b16 %v2118
    %v2186 = vunpack.c.l.b16 %v2119
    %v2187 = vunpack.c.l.b16 %v2120
    %v2188 = vpack.c.b16 %v2157, %v2156
    %v2189 = vpack.c.b16 %v2159, %v2158
    %v2190 = vpack.c.b16 %v2161, %v2160
    %v2191 = vpack.c.b16 %v2163, %v2162
    %v2192 = vpack.c.b16 %v2165, %v2164
    %v2193 = vpack.c.b16 %v2167, %v2166
    %v2194 = vpack.c.b16 %v2169, %v2168
    %v2195 = vpack.c.b16 %v2171, %v2170
    %v2196 = vpack.c.b16 %v2173, %v2172
    %v2197 = vpack.c.b16 %v2175, %v2174
    %v2198 = vpack.c.b16 %v2177, %v2176
    %v2199 = vpack.c.b16 %v2179, %v2178
    %v2200 = vpack.c.b16 %v2181, %v2180
    %v2201 = vpack.c.b16 %v2183, %v2182
    %v2202 = vpack.c.b16 %v2185, %v2184
    %v2203 = vpack.c.b16 %v2187, %v2186
    %2220 = vmatprep.subr.bf16.mxu0 0
    %2221 = vmatpush1.bf16.msra.mxu0 %v2188
    %2222 = vmatprep.subr.bf16.mxu0 0
    %2223 = vmatpush1.bf16.msra.mxu0 %v2189
    %2224 = vmatprep.subr.bf16.mxu0 0
    %2225 = vmatpush1.bf16.msra.mxu0 %v2190
    %2226 = vmatprep.subr.bf16.mxu0 0
    %2227 = vmatpush1.bf16.msra.mxu0 %v2191
    %2228 = vmatprep.subr.bf16.mxu0 0
    %2229 = vmatpush1.bf16.msra.mxu0 %v2192
    %2230 = vmatprep.subr.bf16.mxu0 0
    %2231 = vmatpush1.bf16.msra.mxu0 %v2193
    %2232 = vmatprep.subr.bf16.mxu0 0
    %2233 = vmatpush1.bf16.msra.mxu0 %v2194
    %2234 = vmatprep.subr.bf16.mxu0 0
    %2235 = vmatpush1.bf16.msra.mxu0 %v2195
    %2236 = vmatprep.subr.bf16.mxu0 0
    %2237 = vmatpush1.bf16.msra.mxu0 %v2196
    %2238 = vmatprep.subr.bf16.mxu0 0
    %2239 = vmatpush1.bf16.msra.mxu0 %v2197
    %2240 = vmatprep.subr.bf16.mxu0 0
    %2241 = vmatpush1.bf16.msra.mxu0 %v2198
    %2242 = vmatprep.subr.bf16.mxu0 0
    %2243 = vmatpush1.bf16.msra.mxu0 %v2199
    %2244 = vmatprep.subr.bf16.mxu0 0
    %2245 = vmatpush1.bf16.msra.mxu0 %v2200
    %2246 = vmatprep.subr.bf16.mxu0 0
    %2247 = vmatpush1.bf16.msra.mxu0 %v2201
    %2248 = vmatprep.subr.bf16.mxu0 0
    %2249 = vmatpush1.bf16.msra.mxu0 %v2202
    %2250 = vmatprep.subr.bf16.mxu0 0
    %2251 = vmatpush1.bf16.msra.mxu0 %v2203
    %2252 = vmatprep.mubr.bf16.mxu0 %v2122
    %2253 = vmatmul.mubr.bf16.gmra.mrb[0].mxu0 %v2121
    %v2254 = vpop.f32.mrb[0].mxu0
    %v2255 = vadd.f32 %v2123, %v2254
    %v2256 = vpop.f32.mrb[0].mxu0
    %v2257 = vpop.f32.mrb[0].mxu0
    %v2258 = vadd.f32 %v2123, %v2257
    %v2259 = vpop.f32.mrb[0].mxu0
    %2260 = vdwg.mxu0
    %2261 = vst.msk [vmem:[%s7] sm:$0xff] %vm94, %v442
    %2262 = vst.msk [vmem:[%s7 + $0x8] sm:$0xff] %vm94, %v445
    %2265 = vrot.lane.b32.xlu0 %v262, 16
    %v2266 = vpop.permute.xlu0 %2265
    %2267 = vrot.lane.b32.xlu0 %v265, 16
    %v2268 = vpop.permute.xlu0 %2267
    %vm2271 = vcmask 162944
    %2272 = vst.msk [vmem:[%s7] sm:$0xff] %vm2271, %v2266
    %2273 = vst.msk [vmem:[%s7 + $0x8] sm:$0xff] %vm2271, %v2268
    %2276 = vrot.lane.b32.xlu0 %v1694, 20
    %v2277 = vpop.permute.xlu0 %2276
    %2278 = vrot.lane.b32.xlu0 %v1697, 20
    %v2279 = vpop.permute.xlu0 %2278
    %vm2282 = vcmask 195744
    %2283 = vst.msk [vmem:[%s7] sm:$0xff] %vm2282, %v2277
    %2284 = vst.msk [vmem:[%s7 + $0x8] sm:$0xff] %vm2282, %v2279
    %2287 = vrot.lane.b32.xlu0 %v2255, 24
    %v2288 = vpop.permute.xlu0 %2287
    %2289 = vrot.lane.b32.xlu0 %v2258, 24
    %v2290 = vpop.permute.xlu0 %2289
    %vm2293 = vcmask 244928
    %2294 = vst.msk [vmem:[%s7] sm:$0xff] %vm2293, %v2288
    %2295 = vst.msk [vmem:[%s7 + $0x8] sm:$0xff] %vm2293, %v2290
    // Predicated region
    $region46: #{forward.1} parent=1 // pred_check
      _
    $region47: #{forward.1} parent=1 // pred_check_branch
      %2297 = sbr.rel (0) target = $region49
    $region48: #{forward.1} parent=1 // pred_region
      _
    $region49: #{forward.1} parent=1 // pred_fallthru
      _
    // Predicated region
    $region50: #{forward.1} parent=1 // pred_check
      _
    $region51: #{forward.1} parent=1 // pred_check_branch
      %2299 = sbr.rel (0) target = $region53
    $region52: #{forward.1} parent=1 // pred_region
      _
    $region53: #{forward.1} parent=1 // pred_fallthru
      _
    %2300 = vsyncpa [#allocation3], 1
    %2301 = vsyncpa [#allocation5], 1
    %2302 = vsyncpa [#allocation8], 1

</llo_original>
